<compile_context>
chip_gen: v7x
topology: tpu7x:2x2x1
jax: 0.10.0
libtpu: 0.0.40
codegen_flags: <defaults>
</compile_context>

<pallas_src>
import functools

import jax
import jax.numpy as jnp
from jax import lax
from jax.experimental import pallas as pl
from jax.experimental.pallas import tpu as pltpu


def _flash_attention_kernel(q_ref, k_ref, v_ref, wu_ref, bu_ref, o_ref,
                            m_sc, l_sc, acc_sc, *, mask, tq, tk,
                            approx_reciprocal):
    # q_ref : (heads, tq, s)  bf16        k_ref : (heads, s, tk) bf16 (lane-dense t)
    # v_ref : (heads, tk, s)  bf16        wu_ref: (e, e) bf16     bu_ref: (1, e) f32
    # o_ref : (tq, e) output tile         m/l/acc scratch: f32 running stats
    qi = pl.program_id(1)
    ki = pl.program_id(2)
    nk = pl.num_programs(2)

    @pl.when(ki == 0)
    def _init():
        m_sc[...] = jnp.full_like(m_sc, -jnp.inf)
        l_sc[...] = jnp.zeros_like(l_sc)
        acc_sc[...] = jnp.zeros_like(acc_sc)

    def update(apply_mask):
        # (heads, tq, s) x (heads, s, tk) -> (heads, tq, tk), f32 accumulation.
        scores = jnp.einsum('hqd,hdk->hqk', q_ref[...], k_ref[...],
                            preferred_element_type=jnp.float32)
        if apply_mask:
            # mask_(dot, maskval=-inf, mask_diagonal=False): mask where col > row.
            # Large finite negative instead of -inf (avoids inf-inf NaNs).
            rows = qi * tq + lax.broadcasted_iota(jnp.int32, (tq, tk), 0)
            cols = ki * tk + lax.broadcasted_iota(jnp.int32, (tq, tk), 1)
            scores = jnp.where((cols > rows)[None, :, :],
                               jnp.float32(-1e30), scores)

        # ---- Online softmax update (f32). ----
        m_prev = m_sc[...]
        m_new = jnp.maximum(m_prev, jnp.max(scores, axis=-1, keepdims=True))
        alpha = jnp.exp(m_prev - m_new)
        p = jnp.exp(scores - m_new)                              # (h, tq, tk)
        l_sc[...] = alpha * l_sc[...] + jnp.sum(p, axis=-1, keepdims=True)
        pv = jnp.einsum('hqk,hkd->hqd', p.astype(jnp.bfloat16), v_ref[...],
                        preferred_element_type=jnp.float32)      # (h, tq, s)
        acc_sc[...] = alpha * acc_sc[...] + pv
        m_sc[...] = m_new

    if mask:
        q_first = qi * tq
        q_last = q_first + (tq - 1)
        k_first = ki * tk
        k_last = k_first + (tk - 1)

        # Fully-past chunk (every col <= every row): no mask work needed.
        @pl.when(k_last <= q_first)
        def _past_chunk():
            update(apply_mask=False)

        # Diagonal-straddling chunk: build & apply the iota mask.
        @pl.when(jnp.logical_and(k_last > q_first, k_first <= q_last))
        def _diag_chunk():
            update(apply_mask=True)

        # Fully-future chunks (k_first > q_last) do no compute at all.
    else:
        update(apply_mask=False)

    # ---- Finalize: normalize, concat heads, unifyheads projection + bias. ----
    @pl.when(ki == nk - 1)
    def _finalize():
        heads, _, s = acc_sc.shape
        e = heads * s
        l = l_sc[...]
        inv_l = pl.reciprocal(l, approx=True) if approx_reciprocal else 1.0 / l
        o = acc_sc[...] * inv_l                                   # (h, tq, s)
        o2 = jnp.transpose(o.astype(jnp.bfloat16), (1, 0, 2)).reshape(tq, e)
        y = jnp.dot(o2, wu_ref[...],
                    preferred_element_type=jnp.float32) + bu_ref[...]
        o_ref[...] = y.astype(o_ref.dtype)


def _pick_tile(total, preferred, multiple):
    """Largest tile <= preferred that divides `total` and is a multiple of
    `multiple`; falls back to the full extent if none exists."""
    if total <= preferred:
        return total
    d = (preferred // multiple) * multiple
    while d >= multiple:
        if total % d == 0:
            return d
        d -= multiple
    # TODO(synk): support ragged tiles (pl.BoundedSlice) instead of falling
    # back to full-extent tiles when t has no suitable divisor.
    return total


def _auto_vmem_limit_bytes(heads, tq, tk, s, e, out_itemsize):
    """Rough VMEM budget (lane/sublane padded, double buffering, temporaries)."""
    lane = lambda n: -(-n // 128) * 128
    sub = lambda n: -(-n // 8) * 8
    q_tile = heads * sub(tq) * lane(s) * 2
    k_tile = heads * sub(s) * lane(tk) * 2
    v_tile = heads * sub(tk) * lane(s) * 2
    o_tile = sub(tq) * lane(e) * out_itemsize
    w_tile = sub(e) * lane(e) * 2
    b_tile = sub(1) * lane(e) * 4
    scratch = 2 * heads * sub(tq) * lane(1) * 4 + heads * sub(tq) * lane(s) * 4
    live = heads * sub(tq) * lane(tk) * (4 + 4 + 2) + heads * sub(tq) * lane(s) * 4
    est = 2 * (q_tile + k_tile + v_tile + o_tile) + 2 * (w_tile + b_tile)
    est += scratch + live
    est = int(est * 1.5) + (8 << 20)
    return int(min(max(est, 32 << 20), 112 << 20))


def self_attention_pallas(x, wq, wk, wv, wu, bu, *, heads, mask=False,
                          q_block=128, kv_block=256, approx_reciprocal=True,
                          vmem_limit_bytes=None):
    """Multi-head self attention matching the PyTorch SelfAttention.forward.

    Weights are stored pre-transposed as (in_features, out_features) so that
    y = x @ W (+ bias) == PyTorch's x @ weight.T (+ bias).
    """
    b, t, e = x.shape
    assert e % heads == 0, "embedding dim must be divisible by heads"
    s = e // heads
    out_dtype = x.dtype

    tq = _pick_tile(t, q_block, 8)        # second-to-last dims: multiple of 8
    tk = _pick_tile(t, kv_block, 128)     # K-cache last dim: multiple of 128
    nq = t // tq
    nk = t // tk

    # ---- Q/K/V projections in XLA (bf16 MXU inputs, f32 accumulation). ----
    # The 1/e**(1/4) scaling of q AND k is folded once into Wq as e**-0.5.
    xb = x.astype(jnp.bfloat16)
    wq_s = (wq.astype(jnp.float32) * (float(e) ** -0.5)).astype(jnp.bfloat16)
    wkb = wk.astype(jnp.bfloat16)
    wvb = wv.astype(jnp.bfloat16)
    wub = wu.astype(jnp.bfloat16)
    bub = bu.astype(jnp.float32).reshape(1, e)

    q = jnp.einsum('bte,ef->btf', xb, wq_s, preferred_element_type=jnp.float32)
    k = jnp.einsum('bte,ef->btf', xb, wkb, preferred_element_type=jnp.float32)
    v = jnp.einsum('bte,ef->btf', xb, wvb, preferred_element_type=jnp.float32)
    qh = q.reshape(b, t, heads, s).transpose(0, 2, 1, 3).astype(jnp.bfloat16)  # (b,h,t,s)
    kh = k.reshape(b, t, heads, s).transpose(0, 2, 3, 1).astype(jnp.bfloat16)  # (b,h,s,t)
    vh = v.reshape(b, t, heads, s).transpose(0, 2, 1, 3).astype(jnp.bfloat16)  # (b,h,t,s)

    if vmem_limit_bytes is None:
        vmem_limit_bytes = _auto_vmem_limit_bytes(
            heads, tq, tk, s, e, jnp.dtype(out_dtype).itemsize)

    kernel = functools.partial(_flash_attention_kernel, mask=mask, tq=tq,
                               tk=tk, approx_reciprocal=approx_reciprocal)

    def run(single_buffer_constants):
        # Grid-invariant inputs (Wu, bias) never re-DMA -> single buffer them.
        const_kw = ({"pipeline_mode": pl.Buffered(1)}
                    if single_buffer_constants else {})
        grid_spec = pltpu.PrefetchScalarGridSpec(
            num_scalar_prefetch=0,
            grid=(b, nq, nk),
            in_specs=[
                pl.BlockSpec((pl.Squeezed(), heads, tq, s),
                             lambda bi, qi, ki: (bi, 0, qi, 0)),     # Q tile
                pl.BlockSpec((pl.Squeezed(), heads, s, tk),
                             lambda bi, qi, ki: (bi, 0, 0, ki)),     # K chunk
                pl.BlockSpec((pl.Squeezed(), heads, tk, s),
                             lambda bi, qi, ki: (bi, 0, ki, 0)),     # V chunk
                pl.BlockSpec((e, e), lambda bi, qi, ki: (0, 0), **const_kw),  # Wu
                pl.BlockSpec((1, e), lambda bi, qi, ki: (0, 0), **const_kw),  # bias
            ],
            out_specs=pl.BlockSpec((pl.Squeezed(), tq, e),
                                   lambda bi, qi, ki: (bi, qi, 0)),
            scratch_shapes=[
                pltpu.VMEM((heads, tq, 1), jnp.float32),   # running max
                pltpu.VMEM((heads, tq, 1), jnp.float32),   # running sum
                pltpu.VMEM((heads, tq, s), jnp.float32),   # output accumulator
            ],
        )
        return pl.pallas_call(
            kernel,
            out_shape=jax.ShapeDtypeStruct((b, t, e), out_dtype),
            grid_spec=grid_spec,
            compiler_params=pltpu.CompilerParams(
                # batch and q-tile axes are independent (megacore-friendly);
                # the kv axis carries the online-softmax scratch -> arbitrary.
                dimension_semantics=("parallel", "parallel", "arbitrary"),
                vmem_limit_bytes=vmem_limit_bytes,
            ),
        )(qh, kh, vh, wub, bub)

    try:
        return run(single_buffer_constants=True)
    except Exception:
        # Fallback if the installed jax rejects BlockSpec.pipeline_mode in
        # pallas_call: default double buffering for the constant inputs.
        return run(single_buffer_constants=False)


def self_attention_ref(x, wq, wk, wv, wu, bu, *, heads, mask=False):
    """Pure-JAX f32 reference mirroring the PyTorch forward exactly."""
    b, t, e = x.shape
    s = e // heads
    scale = e ** (1.0 / 4.0)
    q = (x @ wq) / scale
    k = (x @ wk) / scale
    v = x @ wv
    q = q.reshape(b, t, heads, s).transpose(0, 2, 1, 3)   # (b, h, t, s)
    k = k.reshape(b, t, heads, s).transpose(0, 2, 1, 3)
    v = v.reshape(b, t, heads, s).transpose(0, 2, 1, 3)
    dot = jnp.einsum('bhts,bhks->bhtk', q, k)
    if mask:
        row = lax.broadcasted_iota(jnp.int32, (t, t), 0)
        col = lax.broadcasted_iota(jnp.int32, (t, t), 1)
        dot = jnp.where(col > row, -jnp.inf, dot)
    dot = jax.nn.softmax(dot, axis=-1)
    out = jnp.einsum('bhtk,bhks->bhts', dot, v)            # (b, h, t, s)
    out = out.transpose(0, 2, 1, 3).reshape(b, t, e)
    return out @ wu + bu[0]


def _run_case(b, t, e, heads, mask, q_block, kv_block, rtol, atol, case_id):
    key = jax.random.fold_in(jax.random.PRNGKey(0), case_id)
    kx, kq, kk, kv, ku, kb = jax.random.split(key, 6)
    x = jax.random.normal(kx, (b, t, e), dtype=jnp.float32)
    wq = jax.random.normal(kq, (e, e), dtype=jnp.float32) * 0.1
    wk = jax.random.normal(kk, (e, e), dtype=jnp.float32) * 0.1
    wv = jax.random.normal(kv, (e, e), dtype=jnp.float32) * 0.1
    wu = jax.random.normal(ku, (e, e), dtype=jnp.float32) * 0.1
    bu = jax.random.normal(kb, (1, e), dtype=jnp.float32) * 0.1

    out = self_attention_pallas(x, wq, wk, wv, wu, bu, heads=heads, mask=mask,
                                q_block=q_block, kv_block=kv_block)
    out = jax.block_until_ready(out)

    ref = self_attention_ref(x, wq, wk, wv, wu, bu, heads=heads, mask=mask)
    assert out.shape == (b, t, e)
    assert jnp.allclose(out.astype(jnp.float32), ref, rtol=rtol, atol=atol), (
        f"mismatch vs reference in case {case_id}: "
        f"max abs err {float(jnp.max(jnp.abs(out - ref)))}")


if __name__ == "__main__":
    # Case 0: small shapes consistent with the module (single q/kv tile, no
    # mask).  e=32 (< 128 lanes) is inherent to the tiny harness shape.
    _run_case(b=2, t=8, e=32, heads=4, mask=False, q_block=128, kv_block=256,
              rtol=2e-2, atol=2e-2, case_id=0)

    # Case 1: larger shapes exercising q-tiling (4 tiles), kv chunking
    # (2 chunks) with online softmax, causal-mask diagonal chunks, and
    # fully-future chunk skipping.
    _run_case(b=2, t=512, e=128, heads=8, mask=True, q_block=128, kv_block=256,
              rtol=3e-2, atol=3e-2, case_id=1)

    print("KERNEL_OK")
</pallas_src>

<mosaic_0001>
module attributes {stable_mosaic.version = 11 : i64} {
  func.func @_flash_attention_kernel(%arg0: i32, %arg1: i32, %arg2: i32, %arg3: memref<1x4x8x8xbf16, #tpu.memory_space<vmem>>, %arg4: memref<1x4x8x8xbf16, #tpu.memory_space<vmem>>, %arg5: memref<1x4x8x8xbf16, #tpu.memory_space<vmem>>, %arg6: memref<32x32xbf16, #tpu.memory_space<vmem>>, %arg7: memref<1x32xf32, #tpu.memory_space<vmem>>, %arg8: memref<1x8x32xf32, #tpu.memory_space<vmem>>, %arg9: memref<4x8x1xf32, #tpu.memory_space<vmem>>, %arg10: memref<4x8x1xf32, #tpu.memory_space<vmem>>, %arg11: memref<4x8x8xf32, #tpu.memory_space<vmem>>) attributes {dimension_semantics = [#tpu.dimension_semantics<parallel>, #tpu.dimension_semantics<parallel>, #tpu.dimension_semantics<arbitrary>], iteration_bounds = array<i64: 2, 1, 1>, scalar_prefetch = 0 : i64, scratch_operands = 3 : i64, tpu.core_type = #tpu.core_type<tc>, window_params = [{transform_indices = @transform_0, window_bounds = array<i64: 1, 4, 8, 8>}, {transform_indices = @transform_1, window_bounds = array<i64: 1, 4, 8, 8>}, {transform_indices = @transform_2, window_bounds = array<i64: 1, 4, 8, 8>}, {pipeline_mode = #tpu.pipeline_mode<synchronous>, transform_indices = @transform_3, window_bounds = array<i64: 32, 32>}, {pipeline_mode = #tpu.pipeline_mode<synchronous>, transform_indices = @transform_4, window_bounds = array<i64: 1, 32>}, {transform_indices = @transform_5, window_bounds = array<i64: 1, 8, 32>}]} {
    %c0_i32 = arith.constant 0 : i32
    %0 = arith.cmpi eq, %arg2, %c0_i32 : i32
    %1 = arith.extui %0 : i1 to i32
    %c0_i32_0 = arith.constant 0 : i32
    %2 = arith.cmpi ne, %1, %c0_i32_0 : i32
    scf.if %2 {
      %cst_35 = arith.constant 0xFF800000 : f32
      %36 = vector.broadcast %cst_35 : f32 to vector<4x8x1xf32>
      %c0_36 = arith.constant 0 : index
      %c0_37 = arith.constant 0 : index
      %c0_38 = arith.constant 0 : index
      %37 = vector.load %arg9[%c0_36, %c0_37, %c0_38] : memref<4x8x1xf32, #tpu.memory_space<vmem>>, vector<4x8x1xf32>
      tpu.vector_store %arg9[%c0_36, %c0_37, %c0_38], %36 {strides = array<i32>} : memref<4x8x1xf32, #tpu.memory_space<vmem>>, vector<4x8x1xf32>,
      %cst_39 = arith.constant 0.000000e+00 : f32
      %38 = vector.broadcast %cst_39 : f32 to vector<4x8x1xf32>
      %c0_40 = arith.constant 0 : index
      %c0_41 = arith.constant 0 : index
      %c0_42 = arith.constant 0 : index
      %39 = vector.load %arg10[%c0_40, %c0_41, %c0_42] : memref<4x8x1xf32, #tpu.memory_space<vmem>>, vector<4x8x1xf32>
      tpu.vector_store %arg10[%c0_40, %c0_41, %c0_42], %38 {strides = array<i32>} : memref<4x8x1xf32, #tpu.memory_space<vmem>>, vector<4x8x1xf32>,
      %cst_43 = arith.constant 0.000000e+00 : f32
      %40 = vector.broadcast %cst_43 : f32 to vector<4x8x8xf32>
      %c0_44 = arith.constant 0 : index
      %c0_45 = arith.constant 0 : index
      %c0_46 = arith.constant 0 : index
      %41 = vector.load %arg11[%c0_44, %c0_45, %c0_46] : memref<4x8x8xf32, #tpu.memory_space<vmem>>, vector<4x8x8xf32>
      tpu.vector_store %arg11[%c0_44, %c0_45, %c0_46], %40 {strides = array<i32>} : memref<4x8x8xf32, #tpu.memory_space<vmem>>, vector<4x8x8xf32>,
    } else {
    }
    %c0 = arith.constant 0 : index
    %c0_1 = arith.constant 0 : index
    %c0_2 = arith.constant 0 : index
    %c0_3 = arith.constant 0 : index
    %3 = vector.load %arg3[%c0, %c0_1, %c0_2, %c0_3] : memref<1x4x8x8xbf16, #tpu.memory_space<vmem>>, vector<1x4x8x8xbf16>
    %4 = vector.shape_cast %3 : vector<1x4x8x8xbf16> to vector<4x8x8xbf16>
    %c0_4 = arith.constant 0 : index
    %c0_5 = arith.constant 0 : index
    %c0_6 = arith.constant 0 : index
    %c0_7 = arith.constant 0 : index
    %5 = vector.load %arg4[%c0_4, %c0_5, %c0_6, %c0_7] : memref<1x4x8x8xbf16, #tpu.memory_space<vmem>>, vector<1x4x8x8xbf16>
    %6 = vector.shape_cast %5 : vector<1x4x8x8xbf16> to vector<4x8x8xbf16>
    "tpu.trace_start"() <{level = 10 : i32, message = "hqd,hdk->hqk"}> : () -> ()
    %cst = arith.constant dense<0.000000e+00> : vector<4x8x8xf32>
    %7 = tpu.matmul %4, %6, %cst {dimension_numbers = #tpu.dot_dimension_numbers<[2], [1], [1], [2], [0, 0, 0, 1, 1, 2], [0], [0]>} : vector<4x8x8xbf16>, vector<4x8x8xbf16>, vector<4x8x8xf32> -> vector<4x8x8xf32>
    "tpu.trace_stop"() : () -> ()
    %c0_8 = arith.constant 0 : index
    %c0_9 = arith.constant 0 : index
    %c0_10 = arith.constant 0 : index
    %8 = vector.load %arg9[%c0_8, %c0_9, %c0_10] : memref<4x8x1xf32, #tpu.memory_space<vmem>>, vector<4x8x1xf32>
    %cst_11 = arith.constant dense<0xFF800000> : vector<4x8xf32>
    %9 = vector.multi_reduction <maximumf>, %7, %cst_11 [2] : vector<4x8x8xf32> to vector<4x8xf32>
    %10 = vector.shape_cast %9 : vector<4x8xf32> to vector<4x8x1xf32>
    %11 = arith.maximumf %8, %10 : vector<4x8x1xf32>
    %12 = arith.subf %8, %11 : vector<4x8x1xf32>
    %13 = math.exp %12 : vector<4x8x1xf32>
    %14 = vector.broadcast %11 : vector<4x8x1xf32> to vector<4x8x8xf32>
    %15 = arith.subf %7, %14 : vector<4x8x8xf32>
    %16 = math.exp %15 : vector<4x8x8xf32>
    %c0_12 = arith.constant 0 : index
    %c0_13 = arith.constant 0 : index
    %c0_14 = arith.constant 0 : index
    %17 = vector.load %arg10[%c0_12, %c0_13, %c0_14] : memref<4x8x1xf32, #tpu.memory_space<vmem>>, vector<4x8x1xf32>
    %18 = arith.mulf %13, %17 : vector<4x8x1xf32>
    %cst_15 = arith.constant dense<0.000000e+00> : vector<4x8xf32>
    %19 = vector.multi_reduction <add>, %16, %cst_15 [2] : vector<4x8x8xf32> to vector<4x8xf32>
    %20 = vector.shape_cast %19 : vector<4x8xf32> to vector<4x8x1xf32>
    %21 = arith.addf %18, %20 : vector<4x8x1xf32>
    %c0_16 = arith.constant 0 : index
    %c0_17 = arith.constant 0 : index
    %c0_18 = arith.constant 0 : index
    %22 = vector.load %arg10[%c0_16, %c0_17, %c0_18] : memref<4x8x1xf32, #tpu.memory_space<vmem>>, vector<4x8x1xf32>
    tpu.vector_store %arg10[%c0_16, %c0_17, %c0_18], %21 {strides = array<i32>} : memref<4x8x1xf32, #tpu.memory_space<vmem>>, vector<4x8x1xf32>,
    %23 = arith.truncf %16 : vector<4x8x8xf32> to vector<4x8x8xbf16>
    %c0_19 = arith.constant 0 : index
    %c0_20 = arith.constant 0 : index
    %c0_21 = arith.constant 0 : index
    %c0_22 = arith.constant 0 : index
    %24 = vector.load %arg5[%c0_19, %c0_20, %c0_21, %c0_22] : memref<1x4x8x8xbf16, #tpu.memory_space<vmem>>, vector<1x4x8x8xbf16>
    %25 = vector.shape_cast %24 : vector<1x4x8x8xbf16> to vector<4x8x8xbf16>
    "tpu.trace_start"() <{level = 10 : i32, message = "hqk,hkd->hqd"}> : () -> ()
    %cst_23 = arith.constant dense<0.000000e+00> : vector<4x8x8xf32>
    %26 = tpu.matmul %23, %25, %cst_23 {dimension_numbers = #tpu.dot_dimension_numbers<[2], [1], [1], [2], [0, 0, 0, 1, 1, 2], [0], [0]>} : vector<4x8x8xbf16>, vector<4x8x8xbf16>, vector<4x8x8xf32> -> vector<4x8x8xf32>
    "tpu.trace_stop"() : () -> ()
    %c0_24 = arith.constant 0 : index
    %c0_25 = arith.constant 0 : index
    %c0_26 = arith.constant 0 : index
    %27 = vector.load %arg11[%c0_24, %c0_25, %c0_26] : memref<4x8x8xf32, #tpu.memory_space<vmem>>, vector<4x8x8xf32>
    %28 = vector.broadcast %13 : vector<4x8x1xf32> to vector<4x8x8xf32>
    %29 = arith.mulf %28, %27 : vector<4x8x8xf32>
    %30 = arith.addf %29, %26 : vector<4x8x8xf32>
    %c0_27 = arith.constant 0 : index
    %c0_28 = arith.constant 0 : index
    %c0_29 = arith.constant 0 : index
    %31 = vector.load %arg11[%c0_27, %c0_28, %c0_29] : memref<4x8x8xf32, #tpu.memory_space<vmem>>, vector<4x8x8xf32>
    tpu.vector_store %arg11[%c0_27, %c0_28, %c0_29], %30 {strides = array<i32>} : memref<4x8x8xf32, #tpu.memory_space<vmem>>, vector<4x8x8xf32>,
    %c0_30 = arith.constant 0 : index
    %c0_31 = arith.constant 0 : index
    %c0_32 = arith.constant 0 : index
    %32 = vector.load %arg9[%c0_30, %c0_31, %c0_32] : memref<4x8x1xf32, #tpu.memory_space<vmem>>, vector<4x8x1xf32>
    tpu.vector_store %arg9[%c0_30, %c0_31, %c0_32], %11 {strides = array<i32>} : memref<4x8x1xf32, #tpu.memory_space<vmem>>, vector<4x8x1xf32>,
    %c0_i32_33 = arith.constant 0 : i32
    %33 = arith.cmpi eq, %arg2, %c0_i32_33 : i32
    %34 = arith.extui %33 : i1 to i32
    %c0_i32_34 = arith.constant 0 : i32
    %35 = arith.cmpi ne, %34, %c0_i32_34 : i32
    scf.if %35 {
      %c0_35 = arith.constant 0 : index
      %c0_36 = arith.constant 0 : index
      %c0_37 = arith.constant 0 : index
      %36 = vector.load %arg10[%c0_35, %c0_36, %c0_37] : memref<4x8x1xf32, #tpu.memory_space<vmem>>, vector<4x8x1xf32>
      %37 = tpu.reciprocal %36 {approx = true} : vector<4x8x1xf32> -> vector<4x8x1xf32>
      %c0_38 = arith.constant 0 : index
      %c0_39 = arith.constant 0 : index
      %c0_40 = arith.constant 0 : index
      %38 = vector.load %arg11[%c0_38, %c0_39, %c0_40] : memref<4x8x8xf32, #tpu.memory_space<vmem>>, vector<4x8x8xf32>
      %39 = vector.broadcast %37 : vector<4x8x1xf32> to vector<4x8x8xf32>
      %40 = arith.mulf %38, %39 : vector<4x8x8xf32>
      %41 = arith.truncf %40 : vector<4x8x8xf32> to vector<4x8x8xbf16>
      %42 = tpu.transpose %41, [1, 0, 2] : vector<4x8x8xbf16> -> vector<8x4x8xbf16>
      %43 = vector.shape_cast %42 : vector<8x4x8xbf16> to vector<8x32xbf16>
      %c0_41 = arith.constant 0 : index
      %c0_42 = arith.constant 0 : index
      %44 = vector.load %arg6[%c0_41, %c0_42] : memref<32x32xbf16, #tpu.memory_space<vmem>>, vector<32x32xbf16>
      %cst_43 = arith.constant dense<0.000000e+00> : vector<8x32xf32>
      %45 = tpu.matmul %43, %44, %cst_43 {dimension_numbers = #tpu.dot_dimension_numbers<[1], [0], [0], [1], [0, 0, 1, 1], [], []>} : vector<8x32xbf16>, vector<32x32xbf16>, vector<8x32xf32> -> vector<8x32xf32>
      %c0_44 = arith.constant 0 : index
      %c0_45 = arith.constant 0 : index
      %46 = vector.load %arg7[%c0_44, %c0_45] : memref<1x32xf32, #tpu.memory_space<vmem>>, vector<1x32xf32>
      %47 = vector.broadcast %46 : vector<1x32xf32> to vector<8x32xf32>
      %48 = arith.addf %45, %47 : vector<8x32xf32>
      %c0_46 = arith.constant 0 : index
      %c0_47 = arith.constant 0 : index
      %c0_48 = arith.constant 0 : index
      %49 = vector.load %arg8[%c0_46, %c0_47, %c0_48] : memref<1x8x32xf32, #tpu.memory_space<vmem>>, vector<1x8x32xf32>
      %50 = vector.shape_cast %49 : vector<1x8x32xf32> to vector<8x32xf32>
      %51 = vector.shape_cast %48 : vector<8x32xf32> to vector<1x8x32xf32>
      tpu.vector_store %arg8[%c0_46, %c0_47, %c0_48], %51 {strides = array<i32>} : memref<1x8x32xf32, #tpu.memory_space<vmem>>, vector<1x8x32xf32>,
    } else {
    }
    return
  }
  func.func @transform_0(%arg0: i32, %arg1: i32, %arg2: i32) -> (i32, i32, i32, i32) {
    %c0_i32 = arith.constant 0 : i32
    %c0_i32_0 = arith.constant 0 : i32
    %c0_i32_1 = arith.constant 0 : i32
    return %arg0, %c0_i32, %arg1, %c0_i32_0 : i32, i32, i32, i32
  }
  func.func @transform_1(%arg0: i32, %arg1: i32, %arg2: i32) -> (i32, i32, i32, i32) {
    %c0_i32 = arith.constant 0 : i32
    %c0_i32_0 = arith.constant 0 : i32
    %c0_i32_1 = arith.constant 0 : i32
    return %arg0, %c0_i32, %c0_i32_0, %arg2 : i32, i32, i32, i32
  }
  func.func @transform_2(%arg0: i32, %arg1: i32, %arg2: i32) -> (i32, i32, i32, i32) {
    %c0_i32 = arith.constant 0 : i32
    %c0_i32_0 = arith.constant 0 : i32
    %c0_i32_1 = arith.constant 0 : i32
    return %arg0, %c0_i32, %arg2, %c0_i32_0 : i32, i32, i32, i32
  }
  func.func @transform_3(%arg0: i32, %arg1: i32, %arg2: i32) -> (i32, i32) {
    %c0_i32 = arith.constant 0 : i32
    %c0_i32_0 = arith.constant 0 : i32
    %c0_i32_1 = arith.constant 0 : i32
    return %c0_i32, %c0_i32_0 : i32, i32
  }
  func.func @transform_4(%arg0: i32, %arg1: i32, %arg2: i32) -> (i32, i32) {
    %c0_i32 = arith.constant 0 : i32
    %c0_i32_0 = arith.constant 0 : i32
    %c0_i32_1 = arith.constant 0 : i32
    return %c0_i32, %c0_i32_0 : i32, i32
  }
  func.func @transform_5(%arg0: i32, %arg1: i32, %arg2: i32) -> (i32, i32, i32) {
    %c0_i32 = arith.constant 0 : i32
    %c0_i32_0 = arith.constant 0 : i32
    return %arg0, %arg1, %c0_i32 : i32, i32, i32
  }
}

module attributes {stable_mosaic.version = 11 : i64} {
  func.func @_flash_attention_kernel(%arg0: i32, %arg1: i32, %arg2: i32, %arg3: memref<1x4x8x8xbf16, #tpu.memory_space<vmem>>, %arg4: memref<1x4x8x8xbf16, #tpu.memory_space<vmem>>, %arg5: memref<1x4x8x8xbf16, #tpu.memory_space<vmem>>, %arg6: memref<32x32xbf16, #tpu.memory_space<vmem>>, %arg7: memref<1x32xf32, #tpu.memory_space<vmem>>, %arg8: memref<1x8x32xf32, #tpu.memory_space<vmem>>, %arg9: memref<4x8x1xf32, #tpu.memory_space<vmem>>, %arg10: memref<4x8x1xf32, #tpu.memory_space<vmem>>, %arg11: memref<4x8x8xf32, #tpu.memory_space<vmem>>) attributes {dimension_semantics = [#tpu.dimension_semantics<parallel>, #tpu.dimension_semantics<parallel>, #tpu.dimension_semantics<arbitrary>], iteration_bounds = array<i64: 2, 1, 1>, scalar_prefetch = 0 : i64, scratch_operands = 3 : i64, tpu.core_type = #tpu.core_type<tc>, window_params = [{transform_indices = @transform_0, window_bounds = array<i64: 1, 4, 8, 8>}, {transform_indices = @transform_1, window_bounds = array<i64: 1, 4, 8, 8>}, {transform_indices = @transform_2, window_bounds = array<i64: 1, 4, 8, 8>}, {pipeline_mode = #tpu.pipeline_mode<synchronous>, transform_indices = @transform_3, window_bounds = array<i64: 32, 32>}, {pipeline_mode = #tpu.pipeline_mode<synchronous>, transform_indices = @transform_4, window_bounds = array<i64: 1, 32>}, {transform_indices = @transform_5, window_bounds = array<i64: 1, 8, 32>}]} {
    %c0_i32 = arith.constant 0 : i32
    %0 = arith.cmpi eq, %arg2, %c0_i32 : i32
    %1 = arith.extui %0 : i1 to i32
    %c0_i32_0 = arith.constant 0 : i32
    %2 = arith.cmpi ne, %1, %c0_i32_0 : i32
    scf.if %2 {
      %cst_35 = arith.constant 0xFF800000 : f32
      %36 = vector.broadcast %cst_35 : f32 to vector<4x8x1xf32>
      %c0_36 = arith.constant 0 : index
      %c0_37 = arith.constant 0 : index
      %c0_38 = arith.constant 0 : index
      %37 = vector.load %arg9[%c0_36, %c0_37, %c0_38] : memref<4x8x1xf32, #tpu.memory_space<vmem>>, vector<4x8x1xf32>
      tpu.vector_store %arg9[%c0_36, %c0_37, %c0_38], %36 {strides = array<i32>} : memref<4x8x1xf32, #tpu.memory_space<vmem>>, vector<4x8x1xf32>,
      %cst_39 = arith.constant 0.000000e+00 : f32
      %38 = vector.broadcast %cst_39 : f32 to vector<4x8x1xf32>
      %c0_40 = arith.constant 0 : index
      %c0_41 = arith.constant 0 : index
      %c0_42 = arith.constant 0 : index
      %39 = vector.load %arg10[%c0_40, %c0_41, %c0_42] : memref<4x8x1xf32, #tpu.memory_space<vmem>>, vector<4x8x1xf32>
      tpu.vector_store %arg10[%c0_40, %c0_41, %c0_42], %38 {strides = array<i32>} : memref<4x8x1xf32, #tpu.memory_space<vmem>>, vector<4x8x1xf32>,
      %cst_43 = arith.constant 0.000000e+00 : f32
      %40 = vector.broadcast %cst_43 : f32 to vector<4x8x8xf32>
      %c0_44 = arith.constant 0 : index
      %c0_45 = arith.constant 0 : index
      %c0_46 = arith.constant 0 : index
      %41 = vector.load %arg11[%c0_44, %c0_45, %c0_46] : memref<4x8x8xf32, #tpu.memory_space<vmem>>, vector<4x8x8xf32>
      tpu.vector_store %arg11[%c0_44, %c0_45, %c0_46], %40 {strides = array<i32>} : memref<4x8x8xf32, #tpu.memory_space<vmem>>, vector<4x8x8xf32>,
    } else {
    }
    %c0 = arith.constant 0 : index
    %c0_1 = arith.constant 0 : index
    %c0_2 = arith.constant 0 : index
    %c0_3 = arith.constant 0 : index
    %3 = vector.load %arg3[%c0, %c0_1, %c0_2, %c0_3] : memref<1x4x8x8xbf16, #tpu.memory_space<vmem>>, vector<1x4x8x8xbf16>
    %4 = vector.shape_cast %3 : vector<1x4x8x8xbf16> to vector<4x8x8xbf16>
    %c0_4 = arith.constant 0 : index
    %c0_5 = arith.constant 0 : index
    %c0_6 = arith.constant 0 : index
    %c0_7 = arith.constant 0 : index
    %5 = vector.load %arg4[%c0_4, %c0_5, %c0_6, %c0_7] : memref<1x4x8x8xbf16, #tpu.memory_space<vmem>>, vector<1x4x8x8xbf16>
    %6 = vector.shape_cast %5 : vector<1x4x8x8xbf16> to vector<4x8x8xbf16>
    "tpu.trace_start"() <{level = 10 : i32, message = "hqd,hdk->hqk"}> : () -> ()
    %cst = arith.constant dense<0.000000e+00> : vector<4x8x8xf32>
    %7 = tpu.matmul %4, %6, %cst {dimension_numbers = #tpu.dot_dimension_numbers<[2], [1], [1], [2], [0, 0, 0, 1, 1, 2], [0], [0]>} : vector<4x8x8xbf16>, vector<4x8x8xbf16>, vector<4x8x8xf32> -> vector<4x8x8xf32>
    "tpu.trace_stop"() : () -> ()
    %c0_8 = arith.constant 0 : index
    %c0_9 = arith.constant 0 : index
    %c0_10 = arith.constant 0 : index
    %8 = vector.load %arg9[%c0_8, %c0_9, %c0_10] : memref<4x8x1xf32, #tpu.memory_space<vmem>>, vector<4x8x1xf32>
    %cst_11 = arith.constant dense<0xFF800000> : vector<4x8xf32>
    %9 = vector.multi_reduction <maximumf>, %7, %cst_11 [2] : vector<4x8x8xf32> to vector<4x8xf32>
    %10 = vector.shape_cast %9 : vector<4x8xf32> to vector<4x8x1xf32>
    %11 = arith.maximumf %8, %10 : vector<4x8x1xf32>
    %12 = arith.subf %8, %11 : vector<4x8x1xf32>
    %13 = math.exp %12 : vector<4x8x1xf32>
    %14 = vector.broadcast %11 : vector<4x8x1xf32> to vector<4x8x8xf32>
    %15 = arith.subf %7, %14 : vector<4x8x8xf32>
    %16 = math.exp %15 : vector<4x8x8xf32>
    %c0_12 = arith.constant 0 : index
    %c0_13 = arith.constant 0 : index
    %c0_14 = arith.constant 0 : index
    %17 = vector.load %arg10[%c0_12, %c0_13, %c0_14] : memref<4x8x1xf32, #tpu.memory_space<vmem>>, vector<4x8x1xf32>
    %18 = arith.mulf %13, %17 : vector<4x8x1xf32>
    %cst_15 = arith.constant dense<0.000000e+00> : vector<4x8xf32>
    %19 = vector.multi_reduction <add>, %16, %cst_15 [2] : vector<4x8x8xf32> to vector<4x8xf32>
    %20 = vector.shape_cast %19 : vector<4x8xf32> to vector<4x8x1xf32>
    %21 = arith.addf %18, %20 : vector<4x8x1xf32>
    %c0_16 = arith.constant 0 : index
    %c0_17 = arith.constant 0 : index
    %c0_18 = arith.constant 0 : index
    %22 = vector.load %arg10[%c0_16, %c0_17, %c0_18] : memref<4x8x1xf32, #tpu.memory_space<vmem>>, vector<4x8x1xf32>
    tpu.vector_store %arg10[%c0_16, %c0_17, %c0_18], %21 {strides = array<i32>} : memref<4x8x1xf32, #tpu.memory_space<vmem>>, vector<4x8x1xf32>,
    %23 = arith.truncf %16 : vector<4x8x8xf32> to vector<4x8x8xbf16>
    %c0_19 = arith.constant 0 : index
    %c0_20 = arith.constant 0 : index
    %c0_21 = arith.constant 0 : index
    %c0_22 = arith.constant 0 : index
    %24 = vector.load %arg5[%c0_19, %c0_20, %c0_21, %c0_22] : memref<1x4x8x8xbf16, #tpu.memory_space<vmem>>, vector<1x4x8x8xbf16>
    %25 = vector.shape_cast %24 : vector<1x4x8x8xbf16> to vector<4x8x8xbf16>
    "tpu.trace_start"() <{level = 10 : i32, message = "hqk,hkd->hqd"}> : () -> ()
    %cst_23 = arith.constant dense<0.000000e+00> : vector<4x8x8xf32>
    %26 = tpu.matmul %23, %25, %cst_23 {dimension_numbers = #tpu.dot_dimension_numbers<[2], [1], [1], [2], [0, 0, 0, 1, 1, 2], [0], [0]>} : vector<4x8x8xbf16>, vector<4x8x8xbf16>, vector<4x8x8xf32> -> vector<4x8x8xf32>
    "tpu.trace_stop"() : () -> ()
    %c0_24 = arith.constant 0 : index
    %c0_25 = arith.constant 0 : index
    %c0_26 = arith.constant 0 : index
    %27 = vector.load %arg11[%c0_24, %c0_25, %c0_26] : memref<4x8x8xf32, #tpu.memory_space<vmem>>, vector<4x8x8xf32>
    %28 = vector.broadcast %13 : vector<4x8x1xf32> to vector<4x8x8xf32>
    %29 = arith.mulf %28, %27 : vector<4x8x8xf32>
    %30 = arith.addf %29, %26 : vector<4x8x8xf32>
    %c0_27 = arith.constant 0 : index
    %c0_28 = arith.constant 0 : index
    %c0_29 = arith.constant 0 : index
    %31 = vector.load %arg11[%c0_27, %c0_28, %c0_29] : memref<4x8x8xf32, #tpu.memory_space<vmem>>, vector<4x8x8xf32>
    tpu.vector_store %arg11[%c0_27, %c0_28, %c0_29], %30 {strides = array<i32>} : memref<4x8x8xf32, #tpu.memory_space<vmem>>, vector<4x8x8xf32>,
    %c0_30 = arith.constant 0 : index
    %c0_31 = arith.constant 0 : index
    %c0_32 = arith.constant 0 : index
    %32 = vector.load %arg9[%c0_30, %c0_31, %c0_32] : memref<4x8x1xf32, #tpu.memory_space<vmem>>, vector<4x8x1xf32>
    tpu.vector_store %arg9[%c0_30, %c0_31, %c0_32], %11 {strides = array<i32>} : memref<4x8x1xf32, #tpu.memory_space<vmem>>, vector<4x8x1xf32>,
    %c0_i32_33 = arith.constant 0 : i32
    %33 = arith.cmpi eq, %arg2, %c0_i32_33 : i32
    %34 = arith.extui %33 : i1 to i32
    %c0_i32_34 = arith.constant 0 : i32
    %35 = arith.cmpi ne, %34, %c0_i32_34 : i32
    scf.if %35 {
      %c0_35 = arith.constant 0 : index
      %c0_36 = arith.constant 0 : index
      %c0_37 = arith.constant 0 : index
      %36 = vector.load %arg10[%c0_35, %c0_36, %c0_37] : memref<4x8x1xf32, #tpu.memory_space<vmem>>, vector<4x8x1xf32>
      %37 = tpu.reciprocal %36 {approx = true} : vector<4x8x1xf32> -> vector<4x8x1xf32>
      %c0_38 = arith.constant 0 : index
      %c0_39 = arith.constant 0 : index
      %c0_40 = arith.constant 0 : index
      %38 = vector.load %arg11[%c0_38, %c0_39, %c0_40] : memref<4x8x8xf32, #tpu.memory_space<vmem>>, vector<4x8x8xf32>
      %39 = vector.broadcast %37 : vector<4x8x1xf32> to vector<4x8x8xf32>
      %40 = arith.mulf %38, %39 : vector<4x8x8xf32>
      %41 = arith.truncf %40 : vector<4x8x8xf32> to vector<4x8x8xbf16>
      %42 = tpu.transpose %41, [1, 0, 2] : vector<4x8x8xbf16> -> vector<8x4x8xbf16>
      %43 = vector.shape_cast %42 : vector<8x4x8xbf16> to vector<8x32xbf16>
      %c0_41 = arith.constant 0 : index
      %c0_42 = arith.constant 0 : index
      %44 = vector.load %arg6[%c0_41, %c0_42] : memref<32x32xbf16, #tpu.memory_space<vmem>>, vector<32x32xbf16>
      %cst_43 = arith.constant dense<0.000000e+00> : vector<8x32xf32>
      %45 = tpu.matmul %43, %44, %cst_43 {dimension_numbers = #tpu.dot_dimension_numbers<[1], [0], [0], [1], [0, 0, 1, 1], [], []>} : vector<8x32xbf16>, vector<32x32xbf16>, vector<8x32xf32> -> vector<8x32xf32>
      %c0_44 = arith.constant 0 : index
      %c0_45 = arith.constant 0 : index
      %46 = vector.load %arg7[%c0_44, %c0_45] : memref<1x32xf32, #tpu.memory_space<vmem>>, vector<1x32xf32>
      %47 = vector.broadcast %46 : vector<1x32xf32> to vector<8x32xf32>
      %48 = arith.addf %45, %47 : vector<8x32xf32>
      %c0_46 = arith.constant 0 : index
      %c0_47 = arith.constant 0 : index
      %c0_48 = arith.constant 0 : index
      %49 = vector.load %arg8[%c0_46, %c0_47, %c0_48] : memref<1x8x32xf32, #tpu.memory_space<vmem>>, vector<1x8x32xf32>
      %50 = vector.shape_cast %49 : vector<1x8x32xf32> to vector<8x32xf32>
      %51 = vector.shape_cast %48 : vector<8x32xf32> to vector<1x8x32xf32>
      tpu.vector_store %arg8[%c0_46, %c0_47, %c0_48], %51 {strides = array<i32>} : memref<1x8x32xf32, #tpu.memory_space<vmem>>, vector<1x8x32xf32>,
    } else {
    }
    return
  }
  func.func @transform_0(%arg0: i32, %arg1: i32, %arg2: i32) -> (i32, i32, i32, i32) {
    %c0_i32 = arith.constant 0 : i32
    %c0_i32_0 = arith.constant 0 : i32
    %c0_i32_1 = arith.constant 0 : i32
    return %arg0, %c0_i32, %arg1, %c0_i32_0 : i32, i32, i32, i32
  }
  func.func @transform_1(%arg0: i32, %arg1: i32, %arg2: i32) -> (i32, i32, i32, i32) {
    %c0_i32 = arith.constant 0 : i32
    %c0_i32_0 = arith.constant 0 : i32
    %c0_i32_1 = arith.constant 0 : i32
    return %arg0, %c0_i32, %c0_i32_0, %arg2 : i32, i32, i32, i32
  }
  func.func @transform_2(%arg0: i32, %arg1: i32, %arg2: i32) -> (i32, i32, i32, i32) {
    %c0_i32 = arith.constant 0 : i32
    %c0_i32_0 = arith.constant 0 : i32
    %c0_i32_1 = arith.constant 0 : i32
    return %arg0, %c0_i32, %arg2, %c0_i32_0 : i32, i32, i32, i32
  }
  func.func @transform_3(%arg0: i32, %arg1: i32, %arg2: i32) -> (i32, i32) {
    %c0_i32 = arith.constant 0 : i32
    %c0_i32_0 = arith.constant 0 : i32
    %c0_i32_1 = arith.constant 0 : i32
    return %c0_i32, %c0_i32_0 : i32, i32
  }
  func.func @transform_4(%arg0: i32, %arg1: i32, %arg2: i32) -> (i32, i32) {
    %c0_i32 = arith.constant 0 : i32
    %c0_i32_0 = arith.constant 0 : i32
    %c0_i32_1 = arith.constant 0 : i32
    return %c0_i32, %c0_i32_0 : i32, i32
  }
  func.func @transform_5(%arg0: i32, %arg1: i32, %arg2: i32) -> (i32, i32, i32) {
    %c0_i32 = arith.constant 0 : i32
    %c0_i32_0 = arith.constant 0 : i32
    return %arg0, %arg1, %c0_i32 : i32, i32, i32
  }
}

</mosaic_0001>

<llo_original>
// kernel: tpu_custom_call.1
$region0: #{tpu_custom_call.1}
  #allocation0 [shape = 'u32[]', space=smem, size = 0x4, offset = 0x4, fixed_abs, tag = 'smem constant byte address 0x4 - core index']
  #allocation1 [shape = 'u32[144,128]{1,0:T(1,128)}', space=vmem, size = 0x12000, scoped, tag = 'internal scratch']
  #allocation2 [shape = 'f32[4,8,1]{2,1,0:T(8,128)}', space=vmem, size = 0x4000, scoped, tag = 'scratch operand']
  #allocation3 [shape = 'f32[4,8,1]{2,1,0:T(8,128)}', space=vmem, size = 0x4000, scoped, tag = 'scratch operand']
  #allocation4 [shape = 'f32[4,8,8]{2,1,0:T(8,128)}', space=vmem, size = 0x4000, scoped, tag = 'scratch operand']
  %s0 = inlined_call_operand.hbm [shape: bf16[2,4,8,8], index: 0, kind: input, shape index: {}]
  %s1 = inlined_call_operand.hbm [shape: bf16[2,4,8,8], index: 1, kind: input, shape index: {}]
  %s2 = inlined_call_operand.hbm [shape: bf16[2,4,8,8], index: 2, kind: input, shape index: {}]
  %s3 = inlined_call_operand.hbm [shape: bf16[32,32], index: 3, kind: input, shape index: {}]
  %s4 = inlined_call_operand.vmem [shape: f32[1,32], index: 4, kind: input, shape index: {}]
  %s5 = inlined_call_operand.hbm [shape: f32[2,8,32], index: 5, kind: output, shape index: {}]
  %s6 = sld [smem:[#allocation0]]
  $region77: #{tpu_custom_call.1} parent=0
    _
  %s8 = ssub.s32 1, %s6
  %s9 = scalar_select 0, %s8, %s6
  $region1: #{tpu_custom_call.1} parent=0
    #allocation5 [shape = 'u8[16384]{0}', space=vmem, size = 0x4000, scoped, tag = 'input window, operand 0']
    #allocation6 [shape = 's32[2]{0}', space=sflag, size = 0x8, scoped, tag = 'scoped memory for tpu_custom_call.1']
    #allocation7 [shape = 's32[2]{0}', space=sflag, size = 0x8, scoped, tag = 'scoped memory for tpu_custom_call.1']
    #allocation8 [shape = 'u8[16384]{0}', space=vmem, size = 0x4000, scoped, tag = 'input window, operand 1']
    #allocation9 [shape = 's32[2]{0}', space=sflag, size = 0x8, scoped, tag = 'scoped memory for tpu_custom_call.1']
    #allocation10 [shape = 'u8[16384]{0}', space=vmem, size = 0x4000, scoped, tag = 'input window, operand 2']
    #allocation11 [shape = 'u8[8192]{0}', space=vmem, size = 0x2000, scoped, tag = 'input window, operand 3, single buffered']
    #allocation12 [shape = 's32[1]{0}', space=sflag, size = 0x4, scoped, tag = 'scoped memory for tpu_custom_call.1']
    #allocation13 [shape = 'u8[8192]{0}', space=vmem, size = 0x2000, scoped, tag = 'output window, operand 0']
    %10 = vsyncpa [#allocation6], 0
    %s11 = scalar_lea.sflag [#allocation6], 1
    %12 = vsyncpa %s11, 0
    %13 = vsyncpa [#allocation9], 0
    %s14 = scalar_lea.sflag [#allocation9], 1
    %15 = vsyncpa %s14, 0
    %16 = vsyncpa [#allocation12], 0
    %17 = vsyncpa [#allocation7], 0
    %s18 = scalar_lea.sflag [#allocation7], 1
    %19 = vsyncpa %s18, 0
    loop: start=0, step=1, limit=4
    $region2: #{tpu_custom_call.1} parent=1 // loop_pre_header
      _
    $region3: #{tpu_custom_call.1} parent=1 // loop_header
      %s21 = sphi 0, %s25
      %p22 = scmp.ge.s32.totalorder %s21, 4
      %s28 = sphi 0, %s47
      %s29 = sphi 0, %s43
      %s30 = sphi 0, %s39
      %s31 = sphi 0, %s28
      %s32 = sphi 0, %s29
      %s33 = sphi 0, %s30
      %s34 = sphi 0, %s31
      %s35 = sphi 0, %s32
      %s36 = sphi 0, %s33
      %s52 = sphi 0, %s54
      %s55 = sphi 0, %s52
      %s56 = sphi 0, %s55
      %s72 = sphi 0, %s56
      %s80 = sphi 0, %s82
      %s83 = sphi 0, %s80
      %s84 = sphi 0, %s83
      %s100 = sphi 0, %s84
      %s108 = sphi 0, %s110
      %s111 = sphi 0, %s108
      %s112 = sphi 0, %s111
      %s128 = sphi 0, %s112
      %s132 = sphi 0, %s132
      %s134 = sphi 0, %s132
      %s135 = sphi 0, %s134
      %s149 = sphi 0, %s135
      %s153 = sphi 0, %s153
      %s155 = sphi 0, %s153
      %s156 = sphi 0, %s155
      %s170 = sphi 0, %s156
      %s178 = sphi 0, %s180
      %s181 = sphi 0, %s178
      %s182 = sphi 0, %s181
      %s198 = sphi 0, %s182
    $region4: #{tpu_custom_call.1} parent=1 // loop_header_branch
      %24 = sbr.rel (%p22) target = $region8
    $region5: #{tpu_custom_call.1} parent=1 // loop_body
      %s26 = ssub.s32 %s21, 1
      %s27 = ssub.s32 %s21, 2
      %s37 = sadd.s32 1, %s30
      %p38 = scmp.ge.s32.totalorder %s37, 1
      %s39 = scalar_select %p38, 0, %s37
      %s40 = sadd.s32 1, %s29
      %s41 = scalar_select %p38, %s40, %s29
      %p42 = scmp.ge.s32.totalorder %s41, 1
      %s43 = scalar_select %p42, 0, %s41
      %s44 = sadd.s32 1, %s28
      %s45 = scalar_select %p42, %s44, %s28
      %p46 = scmp.ge.s32.totalorder %s45, 2
      %s47 = scalar_select %p46, 0, %s45
      %s48 = ssub.s32 %s28, %s47
      %s49 = ssub.s32 %s29, %s43
      %s50 = sor.u32 %s48, %s49
      %p51 = scmp.eq.s32.totalorder %s50, 0
      %s53 = sadd.s32 %s52, 1
      %s54 = scalar_select %p51, %s52, %s53
      %p57 = pneg %p51
      %p58 = scmp.eq.s32.totalorder %s21, 1
      %p59 = por %p57, %p58
      %p60 = scmp.ne.s32.totalorder %s52, %s55
      %p61 = scmp.eq.s32.totalorder %s21, 0
      %p62 = por %p60, %p61
      %p63 = scmp.ne.s32.totalorder %s52, %s55
      %p64 = scmp.eq.s32.totalorder %s26, 1
      %p65 = por %p63, %p64
      %p66 = scmp.ne.s32.totalorder %s55, %s56
      %p67 = scmp.eq.s32.totalorder %s26, 0
      %p68 = por %p66, %p67
      %p69 = scmp.ne.s32.totalorder %s55, %s56
      %p70 = scmp.eq.s32.totalorder %s27, 1
      %p71 = por %p69, %p70
      %p73 = scmp.ne.s32.totalorder %s56, %s72
      %p74 = scmp.eq.s32.totalorder %s27, 0
      %p75 = por %p73, %p74
      %s76 = ssub.s32 %s28, %s47
      %s77 = ssub.s32 %s30, %s39
      %s78 = sor.u32 %s76, %s77
      %p79 = scmp.eq.s32.totalorder %s78, 0
      %s81 = sadd.s32 %s80, 1
      %s82 = scalar_select %p79, %s80, %s81
      %p85 = pneg %p79
      %p86 = scmp.eq.s32.totalorder %s21, 1
      %p87 = por %p85, %p86
      %p88 = scmp.ne.s32.totalorder %s80, %s83
      %p89 = scmp.eq.s32.totalorder %s21, 0
      %p90 = por %p88, %p89
      %p91 = scmp.ne.s32.totalorder %s80, %s83
      %p92 = scmp.eq.s32.totalorder %s26, 1
      %p93 = por %p91, %p92
      %p94 = scmp.ne.s32.totalorder %s83, %s84
      %p95 = scmp.eq.s32.totalorder %s26, 0
      %p96 = por %p94, %p95
      %p97 = scmp.ne.s32.totalorder %s83, %s84
      %p98 = scmp.eq.s32.totalorder %s27, 1
      %p99 = por %p97, %p98
      %p101 = scmp.ne.s32.totalorder %s84, %s100
      %p102 = scmp.eq.s32.totalorder %s27, 0
      %p103 = por %p101, %p102
      %s104 = ssub.s32 %s28, %s47
      %s105 = ssub.s32 %s30, %s39
      %s106 = sor.u32 %s104, %s105
      %p107 = scmp.eq.s32.totalorder %s106, 0
      %s109 = sadd.s32 %s108, 1
      %s110 = scalar_select %p107, %s108, %s109
      %p113 = pneg %p107
      %p114 = scmp.eq.s32.totalorder %s21, 1
      %p115 = por %p113, %p114
      %p116 = scmp.ne.s32.totalorder %s108, %s111
      %p117 = scmp.eq.s32.totalorder %s21, 0
      %p118 = por %p116, %p117
      %p119 = scmp.ne.s32.totalorder %s108, %s111
      %p120 = scmp.eq.s32.totalorder %s26, 1
      %p121 = por %p119, %p120
      %p122 = scmp.ne.s32.totalorder %s111, %s112
      %p123 = scmp.eq.s32.totalorder %s26, 0
      %p124 = por %p122, %p123
      %p125 = scmp.ne.s32.totalorder %s111, %s112
      %p126 = scmp.eq.s32.totalorder %s27, 1
      %p127 = por %p125, %p126
      %p129 = scmp.ne.s32.totalorder %s112, %s128
      %p130 = scmp.eq.s32.totalorder %s27, 0
      %p131 = por %p129, %p130
      %s133 = sadd.s32 %s132, 1
      %p136 = scmp.eq.s32.totalorder %s21, 1
      %p137 = scmp.ne.s32.totalorder %s132, %s134
      %p138 = scmp.eq.s32.totalorder %s21, 0
      %p139 = por %p137, %p138
      %p140 = scmp.ne.s32.totalorder %s132, %s134
      %p141 = scmp.eq.s32.totalorder %s26, 1
      %p142 = por %p140, %p141
      %p143 = scmp.ne.s32.totalorder %s134, %s135
      %p144 = scmp.eq.s32.totalorder %s26, 0
      %p145 = por %p143, %p144
      %p146 = scmp.ne.s32.totalorder %s134, %s135
      %p147 = scmp.eq.s32.totalorder %s27, 1
      %p148 = por %p146, %p147
      %p150 = scmp.ne.s32.totalorder %s135, %s149
      %p151 = scmp.eq.s32.totalorder %s27, 0
      %p152 = por %p150, %p151
      %s154 = sadd.s32 %s153, 1
      %p157 = scmp.eq.s32.totalorder %s21, 1
      %p158 = scmp.ne.s32.totalorder %s153, %s155
      %p159 = scmp.eq.s32.totalorder %s21, 0
      %p160 = por %p158, %p159
      %p161 = scmp.ne.s32.totalorder %s153, %s155
      %p162 = scmp.eq.s32.totalorder %s26, 1
      %p163 = por %p161, %p162
      %p164 = scmp.ne.s32.totalorder %s155, %s156
      %p165 = scmp.eq.s32.totalorder %s26, 0
      %p166 = por %p164, %p165
      %p167 = scmp.ne.s32.totalorder %s155, %s156
      %p168 = scmp.eq.s32.totalorder %s27, 1
      %p169 = por %p167, %p168
      %p171 = scmp.ne.s32.totalorder %s156, %s170
      %p172 = scmp.eq.s32.totalorder %s27, 0
      %p173 = por %p171, %p172
      %s174 = ssub.s32 %s28, %s47
      %s175 = ssub.s32 %s29, %s43
      %s176 = sor.u32 %s174, %s175
      %p177 = scmp.eq.s32.totalorder %s176, 0
      %s179 = sadd.s32 %s178, 1
      %s180 = scalar_select %p177, %s178, %s179
      %p183 = pneg %p177
      %p184 = scmp.eq.s32.totalorder %s21, 1
      %p185 = por %p183, %p184
      %p186 = scmp.ne.s32.totalorder %s178, %s181
      %p187 = scmp.eq.s32.totalorder %s21, 0
      %p188 = por %p186, %p187
      %p189 = scmp.ne.s32.totalorder %s178, %s181
      %p190 = scmp.eq.s32.totalorder %s26, 1
      %p191 = por %p189, %p190
      %p192 = scmp.ne.s32.totalorder %s181, %s182
      %p193 = scmp.eq.s32.totalorder %s26, 0
      %p194 = por %p192, %p193
      %p195 = scmp.ne.s32.totalorder %s181, %s182
      %p196 = scmp.eq.s32.totalorder %s27, 1
      %p197 = por %p195, %p196
      %p199 = scmp.ne.s32.totalorder %s182, %s198
      %p200 = scmp.eq.s32.totalorder %s27, 0
      %p201 = por %p199, %p200
      %p202 = scmp.le.s32.totalorder 1, %s21
      %p203 = scmp.lt.s32.totalorder %s21, 3
      %p204 = pnand %p202, %p203
      %p205 = pneg %p204
      // Predicated region
      $region9: #{tpu_custom_call.1} parent=5 // pred_check
        _
      $region10: #{tpu_custom_call.1} parent=5 // pred_check_branch
        %207 = sbr.rel (%p204) target = $region12
      $region11: #{tpu_custom_call.1} parent=5 // pred_region
        %s208 = ssub.s32 %s21, 1
        // Predicated region
        $region13: #{tpu_custom_call.1} parent=11 // pred_check
          %p209 = pneg %p145
        $region14: #{tpu_custom_call.1} parent=11 // pred_check_branch
          %211 = sbr.rel (%p209) target = $region16
        $region15: #{tpu_custom_call.1} parent=11 // pred_region
          %s213 = ssub.s32 256, 256
          %214 = vsyncadd [#allocation12], %s213
          %s215 = sshll.u32 [#allocation11], 4
          %s216 = int_to_ptr.vmem [resolvable:$true] %s215
          %221 = dma.hbm_to_vmem [thread:$0]  %s3, 256, %s216, [#allocation12], 64, 64, 4
        $region16: #{tpu_custom_call.1} parent=11 // pred_fallthru
          _
        // Predicated region
        $region17: #{tpu_custom_call.1} parent=11 // pred_check
          %p222 = pneg %p166
        $region18: #{tpu_custom_call.1} parent=11 // pred_check_branch
          %224 = sbr.rel (%p222) target = $region20
        $region19: #{tpu_custom_call.1} parent=11 // pred_region
          _
        $region20: #{tpu_custom_call.1} parent=11 // pred_fallthru
          _
      $region12: #{tpu_custom_call.1} parent=5 // pred_fallthru
        _
      %p225 = scmp.lt.s32.totalorder %s21, 2
      // Predicated region
      $region21: #{tpu_custom_call.1} parent=5 // pred_check
        %p226 = pneg %p225
      $region22: #{tpu_custom_call.1} parent=5 // pred_check_branch
        %228 = sbr.rel (%p226) target = $region24
      $region23: #{tpu_custom_call.1} parent=5 // pred_region
        // Predicated region
        $region25: #{tpu_custom_call.1} parent=23 // pred_check
          %p229 = pneg %p62
        $region26: #{tpu_custom_call.1} parent=23 // pred_check_branch
          %231 = sbr.rel (%p229) target = $region28
        $region27: #{tpu_custom_call.1} parent=23 // pred_region
          %s232 = sand.u32 %s52, 1
          %s233 = scalar_lea.sflag [#allocation6], %s232
          %s234 = sand.u32 %s52, 1
          %s235 = smul.addr %s234, 16
          %s236 = scalar_lea.vmem [#allocation5], %s235
          %s238 = ssub.s32 256, 256
          %239 = vsyncadd %s233, %s238
          %s240 = smul.addr %s28, 4
          %s241 = sadd.s32 %s29, %s240
          %s242 = smul.addr %s241, 64
          %s243 = scalar_lea.hbm %s0, %s242
          %s244 = sshll.u32 %s236, 4
          %s245 = int_to_ptr.vmem [resolvable:$true] %s244
          %250 = dma.hbm_to_vmem [thread:$0]  %s243, 256, %s245, %s233, 64, 64, 4
        $region28: #{tpu_custom_call.1} parent=23 // pred_fallthru
          _
        // Predicated region
        $region29: #{tpu_custom_call.1} parent=23 // pred_check
          %p251 = pneg %p90
        $region30: #{tpu_custom_call.1} parent=23 // pred_check_branch
          %253 = sbr.rel (%p251) target = $region32
        $region31: #{tpu_custom_call.1} parent=23 // pred_region
          %s254 = sand.u32 %s21, 1
          %s255 = scalar_lea.sflag [#allocation9], %s254
          %s256 = sand.u32 %s80, 1
          %s257 = smul.addr %s256, 16
          %s258 = scalar_lea.vmem [#allocation8], %s257
          %s260 = ssub.s32 256, 256
          %261 = vsyncadd %s255, %s260
          %s262 = smul.addr %s28, 4
          %s263 = sadd.s32 %s30, %s262
          %s264 = smul.addr %s263, 64
          %s265 = scalar_lea.hbm %s1, %s264
          %s266 = sshll.u32 %s258, 4
          %s267 = int_to_ptr.vmem [resolvable:$true] %s266
          %272 = dma.hbm_to_vmem [thread:$0]  %s265, 256, %s267, %s255, 64, 64, 4
        $region32: #{tpu_custom_call.1} parent=23 // pred_fallthru
          _
        // Predicated region
        $region33: #{tpu_custom_call.1} parent=23 // pred_check
          %p273 = pneg %p118
        $region34: #{tpu_custom_call.1} parent=23 // pred_check_branch
          %275 = sbr.rel (%p273) target = $region36
        $region35: #{tpu_custom_call.1} parent=23 // pred_region
          %s276 = sand.u32 %s21, 1
          %s277 = scalar_lea.sflag [#allocation9], %s276
          %s278 = sand.u32 %s108, 1
          %s279 = smul.addr %s278, 16
          %s280 = scalar_lea.vmem [#allocation10], %s279
          %s282 = ssub.s32 256, 256
          %283 = vsyncadd %s277, %s282
          %s284 = smul.addr %s28, 4
          %s285 = sadd.s32 %s30, %s284
          %s286 = smul.addr %s285, 64
          %s287 = scalar_lea.hbm %s2, %s286
          %s288 = sshll.u32 %s280, 4
          %s289 = int_to_ptr.vmem [resolvable:$true] %s288
          %294 = dma.hbm_to_vmem [thread:$0]  %s287, 256, %s289, %s277, 64, 64, 4
        $region36: #{tpu_custom_call.1} parent=23 // pred_fallthru
          _
      $region24: #{tpu_custom_call.1} parent=5 // pred_fallthru
        _
      %p295 = scmp.le.s32.totalorder 1, %s21
      %p296 = scmp.lt.s32.totalorder %s21, 3
      %p297 = pnand %p295, %p296
      %p298 = pneg %p297
      // Predicated region
      $region37: #{tpu_custom_call.1} parent=5 // pred_check
        _
      $region38: #{tpu_custom_call.1} parent=5 // pred_check_branch
        %300 = sbr.rel (%p297) target = $region40
      $region39: #{tpu_custom_call.1} parent=5 // pred_region
        %s301 = ssub.s32 %s21, 1
        %s302 = sand.u32 %s55, 1
        %s303 = scalar_lea.sflag [#allocation6], %s302
        %s304 = sand.u32 %s55, 1
        %s305 = smul.addr %s304, 16
        %s306 = scalar_lea.vmem [#allocation5], %s305
        // Predicated region
        $region41: #{tpu_custom_call.1} parent=39 // pred_check
          %p307 = pneg %p68
        $region42: #{tpu_custom_call.1} parent=39 // pred_check_branch
          %309 = sbr.rel (%p307) target = $region44
        $region43: #{tpu_custom_call.1} parent=39 // pred_region
          %310 = dma.done %s303, 256
        $region44: #{tpu_custom_call.1} parent=39 // pred_fallthru
          _
        %s311 = sand.u32 %s26, 1
        %s312 = scalar_lea.sflag [#allocation9], %s311
        %s313 = sand.u32 %s83, 1
        %s314 = smul.addr %s313, 16
        %s315 = scalar_lea.vmem [#allocation8], %s314
        // Predicated region
        $region45: #{tpu_custom_call.1} parent=39 // pred_check
          %p316 = pneg %p96
        $region46: #{tpu_custom_call.1} parent=39 // pred_check_branch
          %318 = sbr.rel (%p316) target = $region48
        $region47: #{tpu_custom_call.1} parent=39 // pred_region
          %319 = dma.done %s312, 256
        $region48: #{tpu_custom_call.1} parent=39 // pred_fallthru
          _
        %s320 = sand.u32 %s26, 1
        %s321 = scalar_lea.sflag [#allocation9], %s320
        %s322 = sand.u32 %s111, 1
        %s323 = smul.addr %s322, 16
        %s324 = scalar_lea.vmem [#allocation10], %s323
        // Predicated region
        $region49: #{tpu_custom_call.1} parent=39 // pred_check
          %p325 = pneg %p124
        $region50: #{tpu_custom_call.1} parent=39 // pred_check_branch
          %327 = sbr.rel (%p325) target = $region52
        $region51: #{tpu_custom_call.1} parent=39 // pred_region
          %328 = dma.done %s321, 256
        $region52: #{tpu_custom_call.1} parent=39 // pred_fallthru
          _
        // Predicated region
        $region53: #{tpu_custom_call.1} parent=39 // pred_check
          %p329 = pneg %p145
        $region54: #{tpu_custom_call.1} parent=39 // pred_check_branch
          %331 = sbr.rel (%p329) target = $region56
        $region55: #{tpu_custom_call.1} parent=39 // pred_region
          %332 = dma.done [#allocation12], 256
        $region56: #{tpu_custom_call.1} parent=39 // pred_fallthru
          _
        %s333 = sand.u32 %s55, 1
        %s334 = scalar_lea.sflag [#allocation6], %s333
        %s335 = sand.u32 %s55, 1
        %s336 = smul.addr %s335, 16
        %s337 = scalar_lea.vmem [#allocation5], %s336
        %p338 = pneg %p68
        %p339 = pneg %p65
        %s340 = sand.u32 %s26, 1
        %s341 = scalar_lea.sflag [#allocation9], %s340
        %s342 = sand.u32 %s83, 1
        %s343 = smul.addr %s342, 16
        %s344 = scalar_lea.vmem [#allocation8], %s343
        %p345 = pneg %p96
        %p346 = pneg %p93
        %s347 = sand.u32 %s26, 1
        %s348 = scalar_lea.sflag [#allocation9], %s347
        %s349 = sand.u32 %s111, 1
        %s350 = smul.addr %s349, 16
        %s351 = scalar_lea.vmem [#allocation10], %s350
        %p352 = pneg %p124
        %p353 = pneg %p121
        %p354 = pneg %p145
        %p355 = pneg %p142
        %p356 = pneg %p166
        %p357 = pneg %p163
        %p358 = pneg %p194
        %p359 = pneg %p191
        %s360 = sand.u32 %s181, 1
        %s361 = scalar_lea.sflag [#allocation7], %s360
        %s362 = sand.u32 %s181, 1
        %s363 = smul.addr %s362, 8
        %s364 = scalar_lea.vmem [#allocation13], %s363
        %p366 = scmp.eq.s32.totalorder %s33, 0
        // Predicated region
        $region57: #{tpu_custom_call.1} parent=39 // pred_check
          %p367 = pneg %p366
        $region58: #{tpu_custom_call.1} parent=39 // pred_check_branch
          %369 = sbr.rel (%p367) target = $region60
        $region59: #{tpu_custom_call.1} parent=39 // pred_region
          %vm370 = vcmask 7168
          %371 = vst.msk [vmem:[#allocation2] sm:$0xff] %vm370, -inf
          %372 = vst.msk [vmem:[#allocation2 + $0x8] sm:$0xff] %vm370, -inf
          %373 = vst.msk [vmem:[#allocation2 + $0x10] sm:$0xff] %vm370, -inf
          %374 = vst.msk [vmem:[#allocation2 + $0x18] sm:$0xff] %vm370, -inf
          %375 = vst.msk [vmem:[#allocation3] sm:$0xff] %vm370, 0.0
          %376 = vst.msk [vmem:[#allocation3 + $0x8] sm:$0xff] %vm370, 0.0
          %377 = vst.msk [vmem:[#allocation3 + $0x10] sm:$0xff] %vm370, 0.0
          %378 = vst.msk [vmem:[#allocation3 + $0x18] sm:$0xff] %vm370, 0.0
          %vm379 = vcmask 64512
          %380 = vst.msk [vmem:[#allocation4] sm:$0xff] %vm379, 0.0
          %381 = vst.msk [vmem:[#allocation4 + $0x8] sm:$0xff] %vm379, 0.0
          %382 = vst.msk [vmem:[#allocation4 + $0x10] sm:$0xff] %vm379, 0.0
          %383 = vst.msk [vmem:[#allocation4 + $0x18] sm:$0xff] %vm379, 0.0
        $region60: #{tpu_custom_call.1} parent=39 // pred_fallthru
          _
        %v384 = vld [vmem:[%s306] sm:$0xf]
        %v385 = vld [vmem:[%s306 + $0x4] sm:$0xf]
        %v386 = vld [vmem:[%s306 + $0x8] sm:$0xf]
        %v387 = vld [vmem:[%s306 + $0xc] sm:$0xf]
        %v388 = vld [vmem:[%s315] sm:$0xf]
        %v389 = vld [vmem:[%s315 + $0x4] sm:$0xf]
        %v390 = vld [vmem:[%s315 + $0x8] sm:$0xf]
        %v391 = vld [vmem:[%s315 + $0xc] sm:$0xf]
        %vm392 = vcmask 64512
        %v394 = vsel %vm392, %v384, 0
        %vm396 = vcmask 1043456
        %v398 = vsel %vm396, %v388, 0
        %400 = vmatprep.subr.bf16.mxu0 0
        %401 = vmatpush1.bf16.msra.mxu0 %v398
        %402 = vmatprep.subr.bf16.mxu0 0
        %403 = vmatpush1.bf16.msra.mxu0 0
        %404 = vmatprep.subr.bf16.mxu0 0
        %405 = vmatpush1.bf16.msra.mxu0 0
        %406 = vmatprep.subr.bf16.mxu0 0
        %407 = vmatpush1.bf16.msra.mxu0 0
        %408 = vmatprep.subr.bf16.mxu0 0
        %409 = vmatpush1.bf16.msra.mxu0 0
        %410 = vmatprep.subr.bf16.mxu0 0
        %411 = vmatpush1.bf16.msra.mxu0 0
        %412 = vmatprep.subr.bf16.mxu0 0
        %413 = vmatpush1.bf16.msra.mxu0 0
        %414 = vmatprep.subr.bf16.mxu0 0
        %415 = vmatpush1.bf16.msra.mxu0 0
        %416 = vmatprep.subr.bf16.mxu0 0
        %417 = vmatpush1.bf16.msra.mxu0 0
        %418 = vmatprep.subr.bf16.mxu0 0
        %419 = vmatpush1.bf16.msra.mxu0 0
        %420 = vmatprep.subr.bf16.mxu0 0
        %421 = vmatpush1.bf16.msra.mxu0 0
        %422 = vmatprep.subr.bf16.mxu0 0
        %423 = vmatpush1.bf16.msra.mxu0 0
        %424 = vmatprep.subr.bf16.mxu0 0
        %425 = vmatpush1.bf16.msra.mxu0 0
        %426 = vmatprep.subr.bf16.mxu0 0
        %427 = vmatpush1.bf16.msra.mxu0 0
        %428 = vmatprep.subr.bf16.mxu0 0
        %429 = vmatpush1.bf16.msra.mxu0 0
        %430 = vmatprep.subr.bf16.mxu0 0
        %431 = vmatpush1.bf16.msra.mxu0 0
        %432 = vmatprep.mubr.bf16.mxu0 0
        %433 = vmatmul.mubr.bf16.gmra.mrb[0].mxu0 %v394
        %v434 = vpop.f32.mrb[0].mxu0
        %v435 = vadd.f32 0.0, %v434
        %v436 = vpop.f32.mrb[0].mxu0
        %v437 = vpop.f32.mrb[0].mxu0
        %v438 = vpop.f32.mrb[0].mxu0
        %439 = vdwg.mxu0
        %v441 = vsel %vm392, %v385, 0
        %v444 = vsel %vm396, %v389, 0
        %446 = vmatprep.subr.bf16.mxu0 0
        %447 = vmatpush1.bf16.msra.mxu0 %v444
        %448 = vmatprep.subr.bf16.mxu0 0
        %449 = vmatpush1.bf16.msra.mxu0 0
        %450 = vmatprep.subr.bf16.mxu0 0
        %451 = vmatpush1.bf16.msra.mxu0 0
        %452 = vmatprep.subr.bf16.mxu0 0
        %453 = vmatpush1.bf16.msra.mxu0 0
        %454 = vmatprep.subr.bf16.mxu0 0
        %455 = vmatpush1.bf16.msra.mxu0 0
        %456 = vmatprep.subr.bf16.mxu0 0
        %457 = vmatpush1.bf16.msra.mxu0 0
        %458 = vmatprep.subr.bf16.mxu0 0
        %459 = vmatpush1.bf16.msra.mxu0 0
        %460 = vmatprep.subr.bf16.mxu0 0
        %461 = vmatpush1.bf16.msra.mxu0 0
        %462 = vmatprep.subr.bf16.mxu0 0
        %463 = vmatpush1.bf16.msra.mxu0 0
        %464 = vmatprep.subr.bf16.mxu0 0
        %465 = vmatpush1.bf16.msra.mxu0 0
        %466 = vmatprep.subr.bf16.mxu0 0
        %467 = vmatpush1.bf16.msra.mxu0 0
        %468 = vmatprep.subr.bf16.mxu0 0
        %469 = vmatpush1.bf16.msra.mxu0 0
        %470 = vmatprep.subr.bf16.mxu0 0
        %471 = vmatpush1.bf16.msra.mxu0 0
        %472 = vmatprep.subr.bf16.mxu0 0
        %473 = vmatpush1.bf16.msra.mxu0 0
        %474 = vmatprep.subr.bf16.mxu0 0
        %475 = vmatpush1.bf16.msra.mxu0 0
        %476 = vmatprep.subr.bf16.mxu0 0
        %477 = vmatpush1.bf16.msra.mxu0 0
        %478 = vmatprep.mubr.bf16.mxu0 0
        %479 = vmatmul.mubr.bf16.gmra.mrb[0].mxu0 %v441
        %v480 = vpop.f32.mrb[0].mxu0
        %v481 = vadd.f32 0.0, %v480
        %v482 = vpop.f32.mrb[0].mxu0
        %v483 = vpop.f32.mrb[0].mxu0
        %v484 = vpop.f32.mrb[0].mxu0
        %485 = vdwg.mxu0
        %v487 = vsel %vm392, %v386, 0
        %v490 = vsel %vm396, %v390, 0
        %492 = vmatprep.subr.bf16.mxu0 0
        %493 = vmatpush1.bf16.msra.mxu0 %v490
        %494 = vmatprep.subr.bf16.mxu0 0
        %495 = vmatpush1.bf16.msra.mxu0 0
        %496 = vmatprep.subr.bf16.mxu0 0
        %497 = vmatpush1.bf16.msra.mxu0 0
        %498 = vmatprep.subr.bf16.mxu0 0
        %499 = vmatpush1.bf16.msra.mxu0 0
        %500 = vmatprep.subr.bf16.mxu0 0
        %501 = vmatpush1.bf16.msra.mxu0 0
        %502 = vmatprep.subr.bf16.mxu0 0
        %503 = vmatpush1.bf16.msra.mxu0 0
        %504 = vmatprep.subr.bf16.mxu0 0
        %505 = vmatpush1.bf16.msra.mxu0 0
        %506 = vmatprep.subr.bf16.mxu0 0
        %507 = vmatpush1.bf16.msra.mxu0 0
        %508 = vmatprep.subr.bf16.mxu0 0
        %509 = vmatpush1.bf16.msra.mxu0 0
        %510 = vmatprep.subr.bf16.mxu0 0
        %511 = vmatpush1.bf16.msra.mxu0 0
        %512 = vmatprep.subr.bf16.mxu0 0
        %513 = vmatpush1.bf16.msra.mxu0 0
        %514 = vmatprep.subr.bf16.mxu0 0
        %515 = vmatpush1.bf16.msra.mxu0 0
        %516 = vmatprep.subr.bf16.mxu0 0
        %517 = vmatpush1.bf16.msra.mxu0 0
        %518 = vmatprep.subr.bf16.mxu0 0
        %519 = vmatpush1.bf16.msra.mxu0 0
        %520 = vmatprep.subr.bf16.mxu0 0
        %521 = vmatpush1.bf16.msra.mxu0 0
        %522 = vmatprep.subr.bf16.mxu0 0
        %523 = vmatpush1.bf16.msra.mxu0 0
        %524 = vmatprep.mubr.bf16.mxu0 0
        %525 = vmatmul.mubr.bf16.gmra.mrb[0].mxu0 %v487
        %v526 = vpop.f32.mrb[0].mxu0
        %v527 = vadd.f32 0.0, %v526
        %v528 = vpop.f32.mrb[0].mxu0
        %v529 = vpop.f32.mrb[0].mxu0
        %v530 = vpop.f32.mrb[0].mxu0
        %531 = vdwg.mxu0
        %v533 = vsel %vm392, %v387, 0
        %v536 = vsel %vm396, %v391, 0
        %538 = vmatprep.subr.bf16.mxu0 0
        %539 = vmatpush1.bf16.msra.mxu0 %v536
        %540 = vmatprep.subr.bf16.mxu0 0
        %541 = vmatpush1.bf16.msra.mxu0 0
        %542 = vmatprep.subr.bf16.mxu0 0
        %543 = vmatpush1.bf16.msra.mxu0 0
        %544 = vmatprep.subr.bf16.mxu0 0
        %545 = vmatpush1.bf16.msra.mxu0 0
        %546 = vmatprep.subr.bf16.mxu0 0
        %547 = vmatpush1.bf16.msra.mxu0 0
        %548 = vmatprep.subr.bf16.mxu0 0
        %549 = vmatpush1.bf16.msra.mxu0 0
        %550 = vmatprep.subr.bf16.mxu0 0
        %551 = vmatpush1.bf16.msra.mxu0 0
        %552 = vmatprep.subr.bf16.mxu0 0
        %553 = vmatpush1.bf16.msra.mxu0 0
        %554 = vmatprep.subr.bf16.mxu0 0
        %555 = vmatpush1.bf16.msra.mxu0 0
        %556 = vmatprep.subr.bf16.mxu0 0
        %557 = vmatpush1.bf16.msra.mxu0 0
        %558 = vmatprep.subr.bf16.mxu0 0
        %559 = vmatpush1.bf16.msra.mxu0 0
        %560 = vmatprep.subr.bf16.mxu0 0
        %561 = vmatpush1.bf16.msra.mxu0 0
        %562 = vmatprep.subr.bf16.mxu0 0
        %563 = vmatpush1.bf16.msra.mxu0 0
        %564 = vmatprep.subr.bf16.mxu0 0
        %565 = vmatpush1.bf16.msra.mxu0 0
        %566 = vmatprep.subr.bf16.mxu0 0
        %567 = vmatpush1.bf16.msra.mxu0 0
        %568 = vmatprep.subr.bf16.mxu0 0
        %569 = vmatpush1.bf16.msra.mxu0 0
        %570 = vmatprep.mubr.bf16.mxu0 0
        %571 = vmatmul.mubr.bf16.gmra.mrb[0].mxu0 %v533
        %v572 = vpop.f32.mrb[0].mxu0
        %v573 = vadd.f32 0.0, %v572
        %v574 = vpop.f32.mrb[0].mxu0
        %v575 = vpop.f32.mrb[0].mxu0
        %v576 = vpop.f32.mrb[0].mxu0
        %577 = vdwg.mxu0
        %v578 = vld [vmem:[#allocation2] sm:$0xff]
        %v579 = vld [vmem:[#allocation2 + $0x8] sm:$0xff]
        %v580 = vld [vmem:[#allocation2 + $0x10] sm:$0xff]
        %v581 = vld [vmem:[#allocation2 + $0x18] sm:$0xff]
        %v582 = vsel %vm392, %v435, -inf
        %583 = vmax.xlane.f32.xlu0 %v582
        %v584 = vpop.xlane.xlu0 %583
        %v585 = vsel %vm392, %v481, -inf
        %586 = vmax.xlane.f32.xlu0 %v585
        %v587 = vpop.xlane.xlu0 %586
        %v588 = vsel %vm392, %v527, -inf
        %589 = vmax.xlane.f32.xlu0 %v588
        %v590 = vpop.xlane.xlu0 %589
        %v591 = vsel %vm392, %v573, -inf
        %592 = vmax.xlane.f32.xlu0 %v591
        %v593 = vpop.xlane.xlu0 %592
        %v594 = vmax.f32 %v578, %v584
        %v595 = vmax.f32 %v579, %v587
        %v596 = vmax.f32 %v580, %v590
        %v597 = vmax.f32 %v581, %v593
        %v598 = vsub.f32 %v578, %v594
        %v599 = vsub.f32 %v579, %v595
        %v600 = vsub.f32 %v580, %v596
        %v601 = vsub.f32 %v581, %v597
        %v602 = vmul.f32 %v598, 1.442695
        %v603 = vpow.pop %v602
        %v604 = vmul.f32 %v599, 1.442695
        %v605 = vpow.pop %v604
        %v606 = vmul.f32 %v600, 1.442695
        %v607 = vpow.pop %v606
        %v608 = vmul.f32 %v601, 1.442695
        %v609 = vpow.pop %v608
        %611 = vset.pattern.permute.xlu0 0
        %612 = vperm.xlu0 %611, %v594
        %v613 = vpop.permute.xlu0 %612
        %616 = vset.pattern.permute.xlu0 0
        %617 = vperm.xlu0 %616, %v595
        %v618 = vpop.permute.xlu0 %617
        %621 = vset.pattern.permute.xlu0 0
        %622 = vperm.xlu0 %621, %v596
        %v623 = vpop.permute.xlu0 %622
        %626 = vset.pattern.permute.xlu0 0
        %627 = vperm.xlu0 %626, %v597
        %v628 = vpop.permute.xlu0 %627
        %v630 = vsub.f32 %v435, %v613
        %v631 = vsub.f32 %v481, %v618
        %v632 = vsub.f32 %v527, %v623
        %v633 = vsub.f32 %v573, %v628
        %v634 = vmul.f32 %v630, 1.442695
        %v635 = vpow.pop %v634
        %v636 = vmul.f32 %v631, 1.442695
        %v637 = vpow.pop %v636
        %v638 = vmul.f32 %v632, 1.442695
        %v639 = vpow.pop %v638
        %v640 = vmul.f32 %v633, 1.442695
        %v641 = vpow.pop %v640
        %v642 = vld [vmem:[#allocation3] sm:$0xff]
        %v643 = vld [vmem:[#allocation3 + $0x8] sm:$0xff]
        %v644 = vld [vmem:[#allocation3 + $0x10] sm:$0xff]
        %v645 = vld [vmem:[#allocation3 + $0x18] sm:$0xff]
        %v646 = vmul.f32 %v603, %v642
        %v647 = vmul.f32 %v605, %v643
        %v648 = vmul.f32 %v607, %v644
        %v649 = vmul.f32 %v609, %v645
        %v650 = vsel %vm392, %v635, 0.0
        %651 = vadd.xlane.f32.xlu0 %v650
        %v652 = vpop.xlane.xlu0 %651
        %v653 = vsel %vm392, %v637, 0.0
        %654 = vadd.xlane.f32.xlu0 %v653
        %v655 = vpop.xlane.xlu0 %654
        %v656 = vsel %vm392, %v639, 0.0
        %657 = vadd.xlane.f32.xlu0 %v656
        %v658 = vpop.xlane.xlu0 %657
        %v659 = vsel %vm392, %v641, 0.0
        %660 = vadd.xlane.f32.xlu0 %v659
        %v661 = vpop.xlane.xlu0 %660
        %v662 = vadd.f32 %v646, %v652
        %v663 = vadd.f32 %v647, %v655
        %v664 = vadd.f32 %v648, %v658
        %v665 = vadd.f32 %v649, %v661
        %vm666 = vcmask 7168
        %667 = vst.msk [vmem:[#allocation3] sm:$0xff] %vm666, %v662
        %668 = vst.msk [vmem:[#allocation3 + $0x8] sm:$0xff] %vm666, %v663
        %669 = vst.msk [vmem:[#allocation3 + $0x10] sm:$0xff] %vm666, %v664
        %670 = vst.msk [vmem:[#allocation3 + $0x18] sm:$0xff] %vm666, %v665
        %v671 = vpack.c.bf16 %v635, %v635
        %v672 = vpack.c.bf16 %v637, %v637
        %v673 = vpack.c.bf16 %v639, %v639
        %v674 = vpack.c.bf16 %v641, %v641
        %v675 = vld [vmem:[%s324] sm:$0xf]
        %v676 = vld [vmem:[%s324 + $0x4] sm:$0xf]
        %v677 = vld [vmem:[%s324 + $0x8] sm:$0xf]
        %v678 = vld [vmem:[%s324 + $0xc] sm:$0xf]
        %v680 = vsel %vm392, %v671, 0
        %v683 = vsel %vm396, %v675, 0
        %685 = vmatprep.subr.bf16.mxu0 0
        %686 = vmatpush1.bf16.msra.mxu0 %v683
        %687 = vmatprep.subr.bf16.mxu0 0
        %688 = vmatpush1.bf16.msra.mxu0 0
        %689 = vmatprep.subr.bf16.mxu0 0
        %690 = vmatpush1.bf16.msra.mxu0 0
        %691 = vmatprep.subr.bf16.mxu0 0
        %692 = vmatpush1.bf16.msra.mxu0 0
        %693 = vmatprep.subr.bf16.mxu0 0
        %694 = vmatpush1.bf16.msra.mxu0 0
        %695 = vmatprep.subr.bf16.mxu0 0
        %696 = vmatpush1.bf16.msra.mxu0 0
        %697 = vmatprep.subr.bf16.mxu0 0
        %698 = vmatpush1.bf16.msra.mxu0 0
        %699 = vmatprep.subr.bf16.mxu0 0
        %700 = vmatpush1.bf16.msra.mxu0 0
        %701 = vmatprep.subr.bf16.mxu0 0
        %702 = vmatpush1.bf16.msra.mxu0 0
        %703 = vmatprep.subr.bf16.mxu0 0
        %704 = vmatpush1.bf16.msra.mxu0 0
        %705 = vmatprep.subr.bf16.mxu0 0
        %706 = vmatpush1.bf16.msra.mxu0 0
        %707 = vmatprep.subr.bf16.mxu0 0
        %708 = vmatpush1.bf16.msra.mxu0 0
        %709 = vmatprep.subr.bf16.mxu0 0
        %710 = vmatpush1.bf16.msra.mxu0 0
        %711 = vmatprep.subr.bf16.mxu0 0
        %712 = vmatpush1.bf16.msra.mxu0 0
        %713 = vmatprep.subr.bf16.mxu0 0
        %714 = vmatpush1.bf16.msra.mxu0 0
        %715 = vmatprep.subr.bf16.mxu0 0
        %716 = vmatpush1.bf16.msra.mxu0 0
        %717 = vmatprep.mubr.bf16.mxu0 0
        %718 = vmatmul.mubr.bf16.gmra.mrb[0].mxu0 %v680
        %v719 = vpop.f32.mrb[0].mxu0
        %v720 = vadd.f32 0.0, %v719
        %v721 = vpop.f32.mrb[0].mxu0
        %v722 = vpop.f32.mrb[0].mxu0
        %v723 = vpop.f32.mrb[0].mxu0
        %724 = vdwg.mxu0
        %v726 = vsel %vm392, %v672, 0
        %v729 = vsel %vm396, %v676, 0
        %731 = vmatprep.subr.bf16.mxu0 0
        %732 = vmatpush1.bf16.msra.mxu0 %v729
        %733 = vmatprep.subr.bf16.mxu0 0
        %734 = vmatpush1.bf16.msra.mxu0 0
        %735 = vmatprep.subr.bf16.mxu0 0
        %736 = vmatpush1.bf16.msra.mxu0 0
        %737 = vmatprep.subr.bf16.mxu0 0
        %738 = vmatpush1.bf16.msra.mxu0 0
        %739 = vmatprep.subr.bf16.mxu0 0
        %740 = vmatpush1.bf16.msra.mxu0 0
        %741 = vmatprep.subr.bf16.mxu0 0
        %742 = vmatpush1.bf16.msra.mxu0 0
        %743 = vmatprep.subr.bf16.mxu0 0
        %744 = vmatpush1.bf16.msra.mxu0 0
        %745 = vmatprep.subr.bf16.mxu0 0
        %746 = vmatpush1.bf16.msra.mxu0 0
        %747 = vmatprep.subr.bf16.mxu0 0
        %748 = vmatpush1.bf16.msra.mxu0 0
        %749 = vmatprep.subr.bf16.mxu0 0
        %750 = vmatpush1.bf16.msra.mxu0 0
        %751 = vmatprep.subr.bf16.mxu0 0
        %752 = vmatpush1.bf16.msra.mxu0 0
        %753 = vmatprep.subr.bf16.mxu0 0
        %754 = vmatpush1.bf16.msra.mxu0 0
        %755 = vmatprep.subr.bf16.mxu0 0
        %756 = vmatpush1.bf16.msra.mxu0 0
        %757 = vmatprep.subr.bf16.mxu0 0
        %758 = vmatpush1.bf16.msra.mxu0 0
        %759 = vmatprep.subr.bf16.mxu0 0
        %760 = vmatpush1.bf16.msra.mxu0 0
        %761 = vmatprep.subr.bf16.mxu0 0
        %762 = vmatpush1.bf16.msra.mxu0 0
        %763 = vmatprep.mubr.bf16.mxu0 0
        %764 = vmatmul.mubr.bf16.gmra.mrb[0].mxu0 %v726
        %v765 = vpop.f32.mrb[0].mxu0
        %v766 = vadd.f32 0.0, %v765
        %v767 = vpop.f32.mrb[0].mxu0
        %v768 = vpop.f32.mrb[0].mxu0
        %v769 = vpop.f32.mrb[0].mxu0
        %770 = vdwg.mxu0
        %v772 = vsel %vm392, %v673, 0
        %v775 = vsel %vm396, %v677, 0
        %777 = vmatprep.subr.bf16.mxu0 0
        %778 = vmatpush1.bf16.msra.mxu0 %v775
        %779 = vmatprep.subr.bf16.mxu0 0
        %780 = vmatpush1.bf16.msra.mxu0 0
        %781 = vmatprep.subr.bf16.mxu0 0
        %782 = vmatpush1.bf16.msra.mxu0 0
        %783 = vmatprep.subr.bf16.mxu0 0
        %784 = vmatpush1.bf16.msra.mxu0 0
        %785 = vmatprep.subr.bf16.mxu0 0
        %786 = vmatpush1.bf16.msra.mxu0 0
        %787 = vmatprep.subr.bf16.mxu0 0
        %788 = vmatpush1.bf16.msra.mxu0 0
        %789 = vmatprep.subr.bf16.mxu0 0
        %790 = vmatpush1.bf16.msra.mxu0 0
        %791 = vmatprep.subr.bf16.mxu0 0
        %792 = vmatpush1.bf16.msra.mxu0 0
        %793 = vmatprep.subr.bf16.mxu0 0
        %794 = vmatpush1.bf16.msra.mxu0 0
        %795 = vmatprep.subr.bf16.mxu0 0
        %796 = vmatpush1.bf16.msra.mxu0 0
        %797 = vmatprep.subr.bf16.mxu0 0
        %798 = vmatpush1.bf16.msra.mxu0 0
        %799 = vmatprep.subr.bf16.mxu0 0
        %800 = vmatpush1.bf16.msra.mxu0 0
        %801 = vmatprep.subr.bf16.mxu0 0
        %802 = vmatpush1.bf16.msra.mxu0 0
        %803 = vmatprep.subr.bf16.mxu0 0
        %804 = vmatpush1.bf16.msra.mxu0 0
        %805 = vmatprep.subr.bf16.mxu0 0
        %806 = vmatpush1.bf16.msra.mxu0 0
        %807 = vmatprep.subr.bf16.mxu0 0
        %808 = vmatpush1.bf16.msra.mxu0 0
        %809 = vmatprep.mubr.bf16.mxu0 0
        %810 = vmatmul.mubr.bf16.gmra.mrb[0].mxu0 %v772
        %v811 = vpop.f32.mrb[0].mxu0
        %v812 = vadd.f32 0.0, %v811
        %v813 = vpop.f32.mrb[0].mxu0
        %v814 = vpop.f32.mrb[0].mxu0
        %v815 = vpop.f32.mrb[0].mxu0
        %816 = vdwg.mxu0
        %v818 = vsel %vm392, %v674, 0
        %v821 = vsel %vm396, %v678, 0
        %823 = vmatprep.subr.bf16.mxu0 0
        %824 = vmatpush1.bf16.msra.mxu0 %v821
        %825 = vmatprep.subr.bf16.mxu0 0
        %826 = vmatpush1.bf16.msra.mxu0 0
        %827 = vmatprep.subr.bf16.mxu0 0
        %828 = vmatpush1.bf16.msra.mxu0 0
        %829 = vmatprep.subr.bf16.mxu0 0
        %830 = vmatpush1.bf16.msra.mxu0 0
        %831 = vmatprep.subr.bf16.mxu0 0
        %832 = vmatpush1.bf16.msra.mxu0 0
        %833 = vmatprep.subr.bf16.mxu0 0
        %834 = vmatpush1.bf16.msra.mxu0 0
        %835 = vmatprep.subr.bf16.mxu0 0
        %836 = vmatpush1.bf16.msra.mxu0 0
        %837 = vmatprep.subr.bf16.mxu0 0
        %838 = vmatpush1.bf16.msra.mxu0 0
        %839 = vmatprep.subr.bf16.mxu0 0
        %840 = vmatpush1.bf16.msra.mxu0 0
        %841 = vmatprep.subr.bf16.mxu0 0
        %842 = vmatpush1.bf16.msra.mxu0 0
        %843 = vmatprep.subr.bf16.mxu0 0
        %844 = vmatpush1.bf16.msra.mxu0 0
        %845 = vmatprep.subr.bf16.mxu0 0
        %846 = vmatpush1.bf16.msra.mxu0 0
        %847 = vmatprep.subr.bf16.mxu0 0
        %848 = vmatpush1.bf16.msra.mxu0 0
        %849 = vmatprep.subr.bf16.mxu0 0
        %850 = vmatpush1.bf16.msra.mxu0 0
        %851 = vmatprep.subr.bf16.mxu0 0
        %852 = vmatpush1.bf16.msra.mxu0 0
        %853 = vmatprep.subr.bf16.mxu0 0
        %854 = vmatpush1.bf16.msra.mxu0 0
        %855 = vmatprep.mubr.bf16.mxu0 0
        %856 = vmatmul.mubr.bf16.gmra.mrb[0].mxu0 %v818
        %v857 = vpop.f32.mrb[0].mxu0
        %v858 = vadd.f32 0.0, %v857
        %v859 = vpop.f32.mrb[0].mxu0
        %v860 = vpop.f32.mrb[0].mxu0
        %v861 = vpop.f32.mrb[0].mxu0
        %862 = vdwg.mxu0
        %v863 = vld [vmem:[#allocation4] sm:$0xff]
        %v864 = vld [vmem:[#allocation4 + $0x8] sm:$0xff]
        %v865 = vld [vmem:[#allocation4 + $0x10] sm:$0xff]
        %v866 = vld [vmem:[#allocation4 + $0x18] sm:$0xff]
        %868 = vset.pattern.permute.xlu0 0
        %869 = vperm.xlu0 %868, %v603
        %v870 = vpop.permute.xlu0 %869
        %873 = vset.pattern.permute.xlu0 0
        %874 = vperm.xlu0 %873, %v605
        %v875 = vpop.permute.xlu0 %874
        %878 = vset.pattern.permute.xlu0 0
        %879 = vperm.xlu0 %878, %v607
        %v880 = vpop.permute.xlu0 %879
        %883 = vset.pattern.permute.xlu0 0
        %884 = vperm.xlu0 %883, %v609
        %v885 = vpop.permute.xlu0 %884
        %v887 = vmul.f32 %v870, %v863
        %v888 = vmul.f32 %v875, %v864
        %v889 = vmul.f32 %v880, %v865
        %v890 = vmul.f32 %v885, %v866
        %v891 = vadd.f32 %v887, %v720
        %v892 = vadd.f32 %v888, %v766
        %v893 = vadd.f32 %v889, %v812
        %v894 = vadd.f32 %v890, %v858
        %895 = vst.msk [vmem:[#allocation4] sm:$0xff] %vm392, %v891
        %896 = vst.msk [vmem:[#allocation4 + $0x8] sm:$0xff] %vm392, %v892
        %897 = vst.msk [vmem:[#allocation4 + $0x10] sm:$0xff] %vm392, %v893
        %898 = vst.msk [vmem:[#allocation4 + $0x18] sm:$0xff] %vm392, %v894
        %899 = vst.msk [vmem:[#allocation2] sm:$0xff] %vm666, %v594
        %900 = vst.msk [vmem:[#allocation2 + $0x8] sm:$0xff] %vm666, %v595
        %901 = vst.msk [vmem:[#allocation2 + $0x10] sm:$0xff] %vm666, %v596
        %902 = vst.msk [vmem:[#allocation2 + $0x18] sm:$0xff] %vm666, %v597
        // Predicated region
        $region61: #{tpu_custom_call.1} parent=39 // pred_check
          %p903 = pneg %p366
        $region62: #{tpu_custom_call.1} parent=39 // pred_check_branch
          %905 = sbr.rel (%p903) target = $region64
        $region63: #{tpu_custom_call.1} parent=39 // pred_region
          %v906 = vld [vmem:[#allocation3] sm:$0xff]
          %v907 = vld [vmem:[#allocation3 + $0x8] sm:$0xff]
          %v908 = vld [vmem:[#allocation3 + $0x10] sm:$0xff]
          %v909 = vld [vmem:[#allocation3 + $0x18] sm:$0xff]
          %v910 = vrcp.pop %v906
          %v911 = vrcp.pop %v907
          %v912 = vrcp.pop %v908
          %v913 = vrcp.pop %v909
          %v914 = vld [vmem:[#allocation4] sm:$0xff]
          %v915 = vld [vmem:[#allocation4 + $0x8] sm:$0xff]
          %v916 = vld [vmem:[#allocation4 + $0x10] sm:$0xff]
          %v917 = vld [vmem:[#allocation4 + $0x18] sm:$0xff]
          %919 = vset.pattern.permute.xlu0 0
          %920 = vperm.xlu0 %919, %v910
          %v921 = vpop.permute.xlu0 %920
          %924 = vset.pattern.permute.xlu0 0
          %925 = vperm.xlu0 %924, %v911
          %v926 = vpop.permute.xlu0 %925
          %929 = vset.pattern.permute.xlu0 0
          %930 = vperm.xlu0 %929, %v912
          %v931 = vpop.permute.xlu0 %930
          %934 = vset.pattern.permute.xlu0 0
          %935 = vperm.xlu0 %934, %v913
          %v936 = vpop.permute.xlu0 %935
          %v938 = vmul.f32 %v914, %v921
          %v939 = vmul.f32 %v915, %v926
          %v940 = vmul.f32 %v916, %v931
          %v941 = vmul.f32 %v917, %v936
          %v942 = vpack.c.bf16 %v938, %v938
          %v944 = vunpack.c.l.s4 1983009808
          %v945 = vunpack.c.0.s8 %v944
          %v946 = vlaneseq
          %v947 = vshrl.u32 %v946, 7
          %v948 = vsub.s32 %v945, %v947
          %v949 = vrot.slane %v942, %v948
          %v950 = vpack.c.bf16 %v940, %v940
          %v952 = vunpack.c.l.s4 1983009808
          %v953 = vunpack.c.0.s8 %v952
          %v954 = vlaneseq
          %v955 = vshrl.u32 %v954, 7
          %v956 = vsub.s32 %v953, %v955
          %v957 = vrot.slane %v950, %v956
          %v958 = vcombine.low %v949, %v957
          %v959 = vcombine.high %v949, %v957
          %v961 = vunpack.c.l.s4 1934713408
          %v962 = vunpack.c.0.s8 %v961
          %v963 = vlaneseq
          %v964 = vshrl.u32 %v963, 7
          %v965 = vsub.s32 %v962, %v964
          %v966 = vrot.slane %v958, %v965
          %v968 = vunpack.c.l.s4 1934713408
          %v969 = vunpack.c.0.s8 %v968
          %v970 = vlaneseq
          %v971 = vshrl.u32 %v970, 7
          %v972 = vsub.s32 %v969, %v971
          %v973 = vrot.slane %v959, %v972
          %v974 = vcombine.high %v966, 0
          %v975 = vcombine.high %v973, 0
          %v976 = vpack.c.bf16 %v939, %v939
          %v978 = vunpack.c.l.s4 1983009808
          %v979 = vunpack.c.0.s8 %v978
          %v980 = vlaneseq
          %v981 = vshrl.u32 %v980, 7
          %v982 = vsub.s32 %v979, %v981
          %v983 = vrot.slane %v976, %v982
          %v984 = vpack.c.bf16 %v941, %v941
          %v986 = vunpack.c.l.s4 1983009808
          %v987 = vunpack.c.0.s8 %v986
          %v988 = vlaneseq
          %v989 = vshrl.u32 %v988, 7
          %v990 = vsub.s32 %v987, %v989
          %v991 = vrot.slane %v984, %v990
          %v992 = vcombine.low %v983, %v991
          %v993 = vcombine.high %v983, %v991
          %v995 = vunpack.c.l.s4 1934713408
          %v996 = vunpack.c.0.s8 %v995
          %v997 = vlaneseq
          %v998 = vshrl.u32 %v997, 7
          %v999 = vsub.s32 %v996, %v998
          %v1000 = vrot.slane %v992, %v999
          %v1002 = vunpack.c.l.s4 1934713408
          %v1003 = vunpack.c.0.s8 %v1002
          %v1004 = vlaneseq
          %v1005 = vshrl.u32 %v1004, 7
          %v1006 = vsub.s32 %v1003, %v1005
          %v1007 = vrot.slane %v993, %v1006
          %v1008 = vcombine.high %v1000, 0
          %v1009 = vcombine.high %v1007, 0
          %v1012 = vpack.i.b16 %v1000, %v966
          %v1014 = vshrl.u32 %v966, 16
          %v1015 = vshrl.u32 %v1000, 16
          %v1016 = vpack.i.b16 %v1015, %v1014
          %v1020 = vpack.i.b16 %v1008, %v974
          %v1022 = vshrl.u32 %v974, 16
          %v1023 = vshrl.u32 %v1008, 16
          %v1024 = vpack.i.b16 %v1023, %v1022
          %v1028 = vpack.i.b16 %v1007, %v973
          %v1030 = vshrl.u32 %v973, 16
          %v1031 = vshrl.u32 %v1007, 16
          %v1032 = vpack.i.b16 %v1031, %v1030
          %v1036 = vpack.i.b16 %v1009, %v975
          %v1038 = vshrl.u32 %v975, 16
          %v1039 = vshrl.u32 %v1009, 16
          %v1040 = vpack.i.b16 %v1039, %v1038
          %v1042 = vcombine.low %v1012, %v1028
          %v1044 = vunpack.c.l.s4 1983009808
          %v1045 = vunpack.c.0.s8 %v1044
          %v1046 = vlaneseq
          %v1047 = vshrl.u32 %v1046, 7
          %v1048 = vsub.s32 %v1045, %v1047
          %v1049 = vrot.slane %v1042, %v1048
          %v1050 = vcombine.low %v1020, %v1036
          %v1052 = vunpack.c.l.s4 1983009808
          %v1053 = vunpack.c.0.s8 %v1052
          %v1054 = vlaneseq
          %v1055 = vshrl.u32 %v1054, 7
          %v1056 = vsub.s32 %v1053, %v1055
          %v1057 = vrot.slane %v1050, %v1056
          %v1058 = vcombine.low %v1049, %v1057
          %v1060 = vunpack.c.l.s4 1934713408
          %v1061 = vunpack.c.0.s8 %v1060
          %v1062 = vlaneseq
          %v1063 = vshrl.u32 %v1062, 7
          %v1064 = vsub.s32 %v1061, %v1063
          %v1065 = vrot.slane %v1058, %v1064
          %v1066 = vcombine.high %v1065, 0
          %v1067 = vcombine.low %v1016, %v1032
          %v1069 = vunpack.c.l.s4 1983009808
          %v1070 = vunpack.c.0.s8 %v1069
          %v1071 = vlaneseq
          %v1072 = vshrl.u32 %v1071, 7
          %v1073 = vsub.s32 %v1070, %v1072
          %v1074 = vrot.slane %v1067, %v1073
          %v1075 = vcombine.low %v1024, %v1040
          %v1077 = vunpack.c.l.s4 1983009808
          %v1078 = vunpack.c.0.s8 %v1077
          %v1079 = vlaneseq
          %v1080 = vshrl.u32 %v1079, 7
          %v1081 = vsub.s32 %v1078, %v1080
          %v1082 = vrot.slane %v1075, %v1081
          %v1083 = vcombine.low %v1074, %v1082
          %v1085 = vunpack.c.l.s4 1934713408
          %v1086 = vunpack.c.0.s8 %v1085
          %v1087 = vlaneseq
          %v1088 = vshrl.u32 %v1087, 7
          %v1089 = vsub.s32 %v1086, %v1088
          %v1090 = vrot.slane %v1083, %v1089
          %v1091 = vcombine.high %v1090, 0
          %v1094 = vpack.i.b16 %v1090, %v1065
          %v1095 = vshrl.u32 %v1065, 16
          %v1096 = vshrl.u32 %v1090, 16
          %v1097 = vpack.i.b16 %v1096, %v1095
          %v1100 = vpack.i.b16 %v1091, %v1066
          %v1101 = vshrl.u32 %v1066, 16
          %v1102 = vshrl.u32 %v1091, 16
          %v1103 = vpack.i.b16 %v1102, %v1101
          %1104 = vrot.lane.b32.xlu0 %v1097, 8
          %v1105 = vpop.permute.xlu0 %1104
          %1106 = vrot.lane.b32.xlu0 %v1100, 16
          %v1107 = vpop.permute.xlu0 %1106
          %1108 = vrot.lane.b32.xlu0 %v1103, 24
          %v1109 = vpop.permute.xlu0 %1108
          %v1112 = vsel %vm392, %v1094, %v1105
          %vm1113 = vcmask 130048
          %v1115 = vsel %vm1113, %v1112, %v1107
          %vm1116 = vcmask 195584
          %v1118 = vsel %vm1116, %v1115, %v1109
          %v1119 = vld [vmem:[#allocation11] sm:$0xf]
          %v1120 = vld [vmem:[#allocation11 + $0x4] sm:$0xf]
          %v1121 = vld [vmem:[#allocation11 + $0x8] sm:$0xf]
          %v1122 = vld [vmem:[#allocation11 + $0xc] sm:$0xf]
          %v1123 = vld [vmem:[%s4] sm:$0x1]
          %v1125 = vlaneseq
          %v1126 = vshrl.u32 %v1125, 7
          %v1127 = vsub.s32 0, %v1126
          %v1128 = vrot.slane %v1123, %v1127
          %v1134 = vunpack.c.l.b16 %v1119
          %v1135 = vunpack.c.l.b16 %v1120
          %v1136 = vunpack.c.l.b16 %v1121
          %v1137 = vunpack.c.l.b16 %v1122
          %v1138 = vpack.c.b16 %v1135, %v1134
          %v1139 = vpack.c.b16 %v1137, %v1136
          %vm1142 = vcmask 261120
          %v1143 = vsel %vm1142, %v1118, 0
          %1145 = vmatprep.subr.bf16.mxu0 0
          %1146 = vmatpush1.bf16.msra.mxu0 %v1138
          %1147 = vmatprep.subr.bf16.mxu0 0
          %1148 = vmatpush1.bf16.msra.mxu0 %v1139
          %1149 = vmatprep.subr.bf16.mxu0 0
          %1150 = vmatpush1.bf16.msra.mxu0 0
          %1151 = vmatprep.subr.bf16.mxu0 0
          %1152 = vmatpush1.bf16.msra.mxu0 0
          %1153 = vmatprep.subr.bf16.mxu0 0
          %1154 = vmatpush1.bf16.msra.mxu0 0
          %1155 = vmatprep.subr.bf16.mxu0 0
          %1156 = vmatpush1.bf16.msra.mxu0 0
          %1157 = vmatprep.subr.bf16.mxu0 0
          %1158 = vmatpush1.bf16.msra.mxu0 0
          %1159 = vmatprep.subr.bf16.mxu0 0
          %1160 = vmatpush1.bf16.msra.mxu0 0
          %1161 = vmatprep.subr.bf16.mxu0 0
          %1162 = vmatpush1.bf16.msra.mxu0 0
          %1163 = vmatprep.subr.bf16.mxu0 0
          %1164 = vmatpush1.bf16.msra.mxu0 0
          %1165 = vmatprep.subr.bf16.mxu0 0
          %1166 = vmatpush1.bf16.msra.mxu0 0
          %1167 = vmatprep.subr.bf16.mxu0 0
          %1168 = vmatpush1.bf16.msra.mxu0 0
          %1169 = vmatprep.subr.bf16.mxu0 0
          %1170 = vmatpush1.bf16.msra.mxu0 0
          %1171 = vmatprep.subr.bf16.mxu0 0
          %1172 = vmatpush1.bf16.msra.mxu0 0
          %1173 = vmatprep.subr.bf16.mxu0 0
          %1174 = vmatpush1.bf16.msra.mxu0 0
          %1175 = vmatprep.subr.bf16.mxu0 0
          %1176 = vmatpush1.bf16.msra.mxu0 0
          %1177 = vmatprep.mubr.bf16.mxu0 0
          %1178 = vmatmul.mubr.bf16.gmra.mrb[0].mxu0 %v1143
          %v1179 = vpop.f32.mrb[0].mxu0
          %v1180 = vadd.f32 %v1128, %v1179
          %v1181 = vpop.f32.mrb[0].mxu0
          %v1182 = vpop.f32.mrb[0].mxu0
          %v1183 = vpop.f32.mrb[0].mxu0
          %1184 = vdwg.mxu0
          %1185 = vst.msk [vmem:[%s364] sm:$0xff] %vm1142, %v1180
        $region64: #{tpu_custom_call.1} parent=39 // pred_fallthru
          _
        %s1186 = sand.u32 %s181, 1
        %s1187 = scalar_lea.sflag [#allocation7], %s1186
        %s1188 = sand.u32 %s181, 1
        %s1189 = smul.addr %s1188, 8
        %s1190 = scalar_lea.vmem [#allocation13], %s1189
        // Predicated region
        $region65: #{tpu_custom_call.1} parent=39 // pred_check
          %p1191 = pneg %p191
        $region66: #{tpu_custom_call.1} parent=39 // pred_check_branch
          %1193 = sbr.rel (%p1191) target = $region68
        $region67: #{tpu_custom_call.1} parent=39 // pred_region
          %s1195 = ssub.s32 128, 128
          %1196 = vsyncadd %s1187, %s1195
          %s1197 = sadd.s32 %s32, %s31
          %s1198 = smul.addr %s1197, 128
          %s1199 = scalar_lea.hbm %s5, %s1198
          %s1201 = sshll.u32 %s1190, 4
          %s1202 = int_to_ptr.vmem [resolvable:$true] %s1201
          %1204 = dma.vmem_to_hbm [thread:$0]  %s1202, 128, %s1199, %s1187
        $region68: #{tpu_custom_call.1} parent=39 // pred_fallthru
          _
      $region40: #{tpu_custom_call.1} parent=5 // pred_fallthru
        _
      %p1205 = scmp.le.s32.totalorder 2, %s21
      // Predicated region
      $region69: #{tpu_custom_call.1} parent=5 // pred_check
        %p1206 = pneg %p1205
      $region70: #{tpu_custom_call.1} parent=5 // pred_check_branch
        %1208 = sbr.rel (%p1206) target = $region72
      $region71: #{tpu_custom_call.1} parent=5 // pred_region
        %s1209 = ssub.s32 %s21, 2
        // Predicated region
        $region73: #{tpu_custom_call.1} parent=71 // pred_check
          %p1210 = pneg %p197
        $region74: #{tpu_custom_call.1} parent=71 // pred_check_branch
          %1212 = sbr.rel (%p1210) target = $region76
        $region75: #{tpu_custom_call.1} parent=71 // pred_region
          %s1213 = sand.u32 %s182, 1
          %s1214 = scalar_lea.sflag [#allocation7], %s1213
          %s1215 = sand.u32 %s182, 1
          %s1216 = smul.addr %s1215, 8
          %s1217 = scalar_lea.vmem [#allocation13], %s1216
          %1218 = dma.done %s1214, 128
        $region76: #{tpu_custom_call.1} parent=71 // pred_fallthru
          _
      $region72: #{tpu_custom_call.1} parent=5 // pred_fallthru
        _
    $region6: #{tpu_custom_call.1} parent=1 // loop_footer
      %s25 = sadd.s32 1, %s21
    $region7: #{tpu_custom_call.1} parent=1 // loop_footer_branch
      %20 = sbr.rel target = $region3
    $region8: #{tpu_custom_call.1} parent=1 // loop_exit
      _
    %1219 = vsyncpa [#allocation6], 1
    %s1220 = scalar_lea.sflag [#allocation6], 1
    %1221 = vsyncpa %s1220, 1
    %1222 = vsyncpa [#allocation9], 1
    %s1223 = scalar_lea.sflag [#allocation9], 1
    %1224 = vsyncpa %s1223, 1
    %1225 = vsyncpa [#allocation12], 1
    %1226 = vsyncpa [#allocation7], 1
    %s1227 = scalar_lea.sflag [#allocation7], 1
    %1228 = vsyncpa %s1227, 1

// kernel: tpu_custom_call.1
$region0: #{tpu_custom_call.1}
  #allocation0 [shape = 'u32[]', space=smem, size = 0x4, offset = 0x4, fixed_abs, tag = 'smem constant byte address 0x4 - core index']
  #allocation1 [shape = 'u32[144,128]{1,0:T(1,128)}', space=vmem, size = 0x12000, scoped, tag = 'internal scratch']
  #allocation2 [shape = 'f32[4,8,1]{2,1,0:T(8,128)}', space=vmem, size = 0x4000, scoped, tag = 'scratch operand']
  #allocation3 [shape = 'f32[4,8,1]{2,1,0:T(8,128)}', space=vmem, size = 0x4000, scoped, tag = 'scratch operand']
  #allocation4 [shape = 'f32[4,8,8]{2,1,0:T(8,128)}', space=vmem, size = 0x4000, scoped, tag = 'scratch operand']
  %s0 = inlined_call_operand.hbm [shape: bf16[2,4,8,8], index: 0, kind: input, shape index: {}]
  %s1 = inlined_call_operand.hbm [shape: bf16[2,4,8,8], index: 1, kind: input, shape index: {}]
  %s2 = inlined_call_operand.hbm [shape: bf16[2,4,8,8], index: 2, kind: input, shape index: {}]
  %s3 = inlined_call_operand.hbm [shape: bf16[32,32], index: 3, kind: input, shape index: {}]
  %s4 = inlined_call_operand.vmem [shape: f32[1,32], index: 4, kind: input, shape index: {}]
  %s5 = inlined_call_operand.hbm [shape: f32[2,8,32], index: 5, kind: output, shape index: {}]
  %s6 = sld [smem:[#allocation0]]
  $region77: #{tpu_custom_call.1} parent=0
    _
  %s8 = ssub.s32 1, %s6
  %s9 = scalar_select 0, %s8, %s6
  $region1: #{tpu_custom_call.1} parent=0
    #allocation5 [shape = 'u8[16384]{0}', space=vmem, size = 0x4000, scoped, tag = 'input window, operand 0']
    #allocation6 [shape = 's32[2]{0}', space=sflag, size = 0x8, scoped, tag = 'scoped memory for tpu_custom_call.1']
    #allocation7 [shape = 's32[2]{0}', space=sflag, size = 0x8, scoped, tag = 'scoped memory for tpu_custom_call.1']
    #allocation8 [shape = 'u8[16384]{0}', space=vmem, size = 0x4000, scoped, tag = 'input window, operand 1']
    #allocation9 [shape = 's32[2]{0}', space=sflag, size = 0x8, scoped, tag = 'scoped memory for tpu_custom_call.1']
    #allocation10 [shape = 'u8[16384]{0}', space=vmem, size = 0x4000, scoped, tag = 'input window, operand 2']
    #allocation11 [shape = 'u8[8192]{0}', space=vmem, size = 0x2000, scoped, tag = 'input window, operand 3, single buffered']
    #allocation12 [shape = 's32[1]{0}', space=sflag, size = 0x4, scoped, tag = 'scoped memory for tpu_custom_call.1']
    #allocation13 [shape = 'u8[8192]{0}', space=vmem, size = 0x2000, scoped, tag = 'output window, operand 0']
    %10 = vsyncpa [#allocation6], 0
    %s11 = scalar_lea.sflag [#allocation6], 1
    %12 = vsyncpa %s11, 0
    %13 = vsyncpa [#allocation9], 0
    %s14 = scalar_lea.sflag [#allocation9], 1
    %15 = vsyncpa %s14, 0
    %16 = vsyncpa [#allocation12], 0
    %17 = vsyncpa [#allocation7], 0
    %s18 = scalar_lea.sflag [#allocation7], 1
    %19 = vsyncpa %s18, 0
    loop: start=0, step=1, limit=4
    $region2: #{tpu_custom_call.1} parent=1 // loop_pre_header
      _
    $region3: #{tpu_custom_call.1} parent=1 // loop_header
      %s21 = sphi 0, %s25
      %p22 = scmp.ge.s32.totalorder %s21, 4
      %s28 = sphi 0, %s47
      %s29 = sphi 0, %s43
      %s30 = sphi 0, %s39
      %s31 = sphi 0, %s28
      %s32 = sphi 0, %s29
      %s33 = sphi 0, %s30
      %s34 = sphi 0, %s31
      %s35 = sphi 0, %s32
      %s36 = sphi 0, %s33
      %s52 = sphi 0, %s54
      %s55 = sphi 0, %s52
      %s56 = sphi 0, %s55
      %s72 = sphi 0, %s56
      %s80 = sphi 0, %s82
      %s83 = sphi 0, %s80
      %s84 = sphi 0, %s83
      %s100 = sphi 0, %s84
      %s108 = sphi 0, %s110
      %s111 = sphi 0, %s108
      %s112 = sphi 0, %s111
      %s128 = sphi 0, %s112
      %s132 = sphi 0, %s132
      %s134 = sphi 0, %s132
      %s135 = sphi 0, %s134
      %s149 = sphi 0, %s135
      %s153 = sphi 0, %s153
      %s155 = sphi 0, %s153
      %s156 = sphi 0, %s155
      %s170 = sphi 0, %s156
      %s178 = sphi 0, %s180
      %s181 = sphi 0, %s178
      %s182 = sphi 0, %s181
      %s198 = sphi 0, %s182
    $region4: #{tpu_custom_call.1} parent=1 // loop_header_branch
      %24 = sbr.rel (%p22) target = $region8
    $region5: #{tpu_custom_call.1} parent=1 // loop_body
      %s26 = ssub.s32 %s21, 1
      %s27 = ssub.s32 %s21, 2
      %s37 = sadd.s32 1, %s30
      %p38 = scmp.ge.s32.totalorder %s37, 1
      %s39 = scalar_select %p38, 0, %s37
      %s40 = sadd.s32 1, %s29
      %s41 = scalar_select %p38, %s40, %s29
      %p42 = scmp.ge.s32.totalorder %s41, 1
      %s43 = scalar_select %p42, 0, %s41
      %s44 = sadd.s32 1, %s28
      %s45 = scalar_select %p42, %s44, %s28
      %p46 = scmp.ge.s32.totalorder %s45, 2
      %s47 = scalar_select %p46, 0, %s45
      %s48 = ssub.s32 %s28, %s47
      %s49 = ssub.s32 %s29, %s43
      %s50 = sor.u32 %s48, %s49
      %p51 = scmp.eq.s32.totalorder %s50, 0
      %s53 = sadd.s32 %s52, 1
      %s54 = scalar_select %p51, %s52, %s53
      %p57 = pneg %p51
      %p58 = scmp.eq.s32.totalorder %s21, 1
      %p59 = por %p57, %p58
      %p60 = scmp.ne.s32.totalorder %s52, %s55
      %p61 = scmp.eq.s32.totalorder %s21, 0
      %p62 = por %p60, %p61
      %p63 = scmp.ne.s32.totalorder %s52, %s55
      %p64 = scmp.eq.s32.totalorder %s26, 1
      %p65 = por %p63, %p64
      %p66 = scmp.ne.s32.totalorder %s55, %s56
      %p67 = scmp.eq.s32.totalorder %s26, 0
      %p68 = por %p66, %p67
      %p69 = scmp.ne.s32.totalorder %s55, %s56
      %p70 = scmp.eq.s32.totalorder %s27, 1
      %p71 = por %p69, %p70
      %p73 = scmp.ne.s32.totalorder %s56, %s72
      %p74 = scmp.eq.s32.totalorder %s27, 0
      %p75 = por %p73, %p74
      %s76 = ssub.s32 %s28, %s47
      %s77 = ssub.s32 %s30, %s39
      %s78 = sor.u32 %s76, %s77
      %p79 = scmp.eq.s32.totalorder %s78, 0
      %s81 = sadd.s32 %s80, 1
      %s82 = scalar_select %p79, %s80, %s81
      %p85 = pneg %p79
      %p86 = scmp.eq.s32.totalorder %s21, 1
      %p87 = por %p85, %p86
      %p88 = scmp.ne.s32.totalorder %s80, %s83
      %p89 = scmp.eq.s32.totalorder %s21, 0
      %p90 = por %p88, %p89
      %p91 = scmp.ne.s32.totalorder %s80, %s83
      %p92 = scmp.eq.s32.totalorder %s26, 1
      %p93 = por %p91, %p92
      %p94 = scmp.ne.s32.totalorder %s83, %s84
      %p95 = scmp.eq.s32.totalorder %s26, 0
      %p96 = por %p94, %p95
      %p97 = scmp.ne.s32.totalorder %s83, %s84
      %p98 = scmp.eq.s32.totalorder %s27, 1
      %p99 = por %p97, %p98
      %p101 = scmp.ne.s32.totalorder %s84, %s100
      %p102 = scmp.eq.s32.totalorder %s27, 0
      %p103 = por %p101, %p102
      %s104 = ssub.s32 %s28, %s47
      %s105 = ssub.s32 %s30, %s39
      %s106 = sor.u32 %s104, %s105
      %p107 = scmp.eq.s32.totalorder %s106, 0
      %s109 = sadd.s32 %s108, 1
      %s110 = scalar_select %p107, %s108, %s109
      %p113 = pneg %p107
      %p114 = scmp.eq.s32.totalorder %s21, 1
      %p115 = por %p113, %p114
      %p116 = scmp.ne.s32.totalorder %s108, %s111
      %p117 = scmp.eq.s32.totalorder %s21, 0
      %p118 = por %p116, %p117
      %p119 = scmp.ne.s32.totalorder %s108, %s111
      %p120 = scmp.eq.s32.totalorder %s26, 1
      %p121 = por %p119, %p120
      %p122 = scmp.ne.s32.totalorder %s111, %s112
      %p123 = scmp.eq.s32.totalorder %s26, 0
      %p124 = por %p122, %p123
      %p125 = scmp.ne.s32.totalorder %s111, %s112
      %p126 = scmp.eq.s32.totalorder %s27, 1
      %p127 = por %p125, %p126
      %p129 = scmp.ne.s32.totalorder %s112, %s128
      %p130 = scmp.eq.s32.totalorder %s27, 0
      %p131 = por %p129, %p130
      %s133 = sadd.s32 %s132, 1
      %p136 = scmp.eq.s32.totalorder %s21, 1
      %p137 = scmp.ne.s32.totalorder %s132, %s134
      %p138 = scmp.eq.s32.totalorder %s21, 0
      %p139 = por %p137, %p138
      %p140 = scmp.ne.s32.totalorder %s132, %s134
      %p141 = scmp.eq.s32.totalorder %s26, 1
      %p142 = por %p140, %p141
      %p143 = scmp.ne.s32.totalorder %s134, %s135
      %p144 = scmp.eq.s32.totalorder %s26, 0
      %p145 = por %p143, %p144
      %p146 = scmp.ne.s32.totalorder %s134, %s135
      %p147 = scmp.eq.s32.totalorder %s27, 1
      %p148 = por %p146, %p147
      %p150 = scmp.ne.s32.totalorder %s135, %s149
      %p151 = scmp.eq.s32.totalorder %s27, 0
      %p152 = por %p150, %p151
      %s154 = sadd.s32 %s153, 1
      %p157 = scmp.eq.s32.totalorder %s21, 1
      %p158 = scmp.ne.s32.totalorder %s153, %s155
      %p159 = scmp.eq.s32.totalorder %s21, 0
      %p160 = por %p158, %p159
      %p161 = scmp.ne.s32.totalorder %s153, %s155
      %p162 = scmp.eq.s32.totalorder %s26, 1
      %p163 = por %p161, %p162
      %p164 = scmp.ne.s32.totalorder %s155, %s156
      %p165 = scmp.eq.s32.totalorder %s26, 0
      %p166 = por %p164, %p165
      %p167 = scmp.ne.s32.totalorder %s155, %s156
      %p168 = scmp.eq.s32.totalorder %s27, 1
      %p169 = por %p167, %p168
      %p171 = scmp.ne.s32.totalorder %s156, %s170
      %p172 = scmp.eq.s32.totalorder %s27, 0
      %p173 = por %p171, %p172
      %s174 = ssub.s32 %s28, %s47
      %s175 = ssub.s32 %s29, %s43
      %s176 = sor.u32 %s174, %s175
      %p177 = scmp.eq.s32.totalorder %s176, 0
      %s179 = sadd.s32 %s178, 1
      %s180 = scalar_select %p177, %s178, %s179
      %p183 = pneg %p177
      %p184 = scmp.eq.s32.totalorder %s21, 1
      %p185 = por %p183, %p184
      %p186 = scmp.ne.s32.totalorder %s178, %s181
      %p187 = scmp.eq.s32.totalorder %s21, 0
      %p188 = por %p186, %p187
      %p189 = scmp.ne.s32.totalorder %s178, %s181
      %p190 = scmp.eq.s32.totalorder %s26, 1
      %p191 = por %p189, %p190
      %p192 = scmp.ne.s32.totalorder %s181, %s182
      %p193 = scmp.eq.s32.totalorder %s26, 0
      %p194 = por %p192, %p193
      %p195 = scmp.ne.s32.totalorder %s181, %s182
      %p196 = scmp.eq.s32.totalorder %s27, 1
      %p197 = por %p195, %p196
      %p199 = scmp.ne.s32.totalorder %s182, %s198
      %p200 = scmp.eq.s32.totalorder %s27, 0
      %p201 = por %p199, %p200
      %p202 = scmp.le.s32.totalorder 1, %s21
      %p203 = scmp.lt.s32.totalorder %s21, 3
      %p204 = pnand %p202, %p203
      %p205 = pneg %p204
      // Predicated region
      $region9: #{tpu_custom_call.1} parent=5 // pred_check
        _
      $region10: #{tpu_custom_call.1} parent=5 // pred_check_branch
        %207 = sbr.rel (%p204) target = $region12
      $region11: #{tpu_custom_call.1} parent=5 // pred_region
        %s208 = ssub.s32 %s21, 1
        // Predicated region
        $region13: #{tpu_custom_call.1} parent=11 // pred_check
          %p209 = pneg %p145
        $region14: #{tpu_custom_call.1} parent=11 // pred_check_branch
          %211 = sbr.rel (%p209) target = $region16
        $region15: #{tpu_custom_call.1} parent=11 // pred_region
          %s213 = ssub.s32 256, 256
          %214 = vsyncadd [#allocation12], %s213
          %s215 = sshll.u32 [#allocation11], 4
          %s216 = int_to_ptr.vmem [resolvable:$true] %s215
          %221 = dma.hbm_to_vmem [thread:$0]  %s3, 256, %s216, [#allocation12], 64, 64, 4
        $region16: #{tpu_custom_call.1} parent=11 // pred_fallthru
          _
        // Predicated region
        $region17: #{tpu_custom_call.1} parent=11 // pred_check
          %p222 = pneg %p166
        $region18: #{tpu_custom_call.1} parent=11 // pred_check_branch
          %224 = sbr.rel (%p222) target = $region20
        $region19: #{tpu_custom_call.1} parent=11 // pred_region
          _
        $region20: #{tpu_custom_call.1} parent=11 // pred_fallthru
          _
      $region12: #{tpu_custom_call.1} parent=5 // pred_fallthru
        _
      %p225 = scmp.lt.s32.totalorder %s21, 2
      // Predicated region
      $region21: #{tpu_custom_call.1} parent=5 // pred_check
        %p226 = pneg %p225
      $region22: #{tpu_custom_call.1} parent=5 // pred_check_branch
        %228 = sbr.rel (%p226) target = $region24
      $region23: #{tpu_custom_call.1} parent=5 // pred_region
        // Predicated region
        $region25: #{tpu_custom_call.1} parent=23 // pred_check
          %p229 = pneg %p62
        $region26: #{tpu_custom_call.1} parent=23 // pred_check_branch
          %231 = sbr.rel (%p229) target = $region28
        $region27: #{tpu_custom_call.1} parent=23 // pred_region
          %s232 = sand.u32 %s52, 1
          %s233 = scalar_lea.sflag [#allocation6], %s232
          %s234 = sand.u32 %s52, 1
          %s235 = smul.addr %s234, 16
          %s236 = scalar_lea.vmem [#allocation5], %s235
          %s238 = ssub.s32 256, 256
          %239 = vsyncadd %s233, %s238
          %s240 = smul.addr %s28, 4
          %s241 = sadd.s32 %s29, %s240
          %s242 = smul.addr %s241, 64
          %s243 = scalar_lea.hbm %s0, %s242
          %s244 = sshll.u32 %s236, 4
          %s245 = int_to_ptr.vmem [resolvable:$true] %s244
          %250 = dma.hbm_to_vmem [thread:$0]  %s243, 256, %s245, %s233, 64, 64, 4
        $region28: #{tpu_custom_call.1} parent=23 // pred_fallthru
          _
        // Predicated region
        $region29: #{tpu_custom_call.1} parent=23 // pred_check
          %p251 = pneg %p90
        $region30: #{tpu_custom_call.1} parent=23 // pred_check_branch
          %253 = sbr.rel (%p251) target = $region32
        $region31: #{tpu_custom_call.1} parent=23 // pred_region
          %s254 = sand.u32 %s21, 1
          %s255 = scalar_lea.sflag [#allocation9], %s254
          %s256 = sand.u32 %s80, 1
          %s257 = smul.addr %s256, 16
          %s258 = scalar_lea.vmem [#allocation8], %s257
          %s260 = ssub.s32 256, 256
          %261 = vsyncadd %s255, %s260
          %s262 = smul.addr %s28, 4
          %s263 = sadd.s32 %s30, %s262
          %s264 = smul.addr %s263, 64
          %s265 = scalar_lea.hbm %s1, %s264
          %s266 = sshll.u32 %s258, 4
          %s267 = int_to_ptr.vmem [resolvable:$true] %s266
          %272 = dma.hbm_to_vmem [thread:$0]  %s265, 256, %s267, %s255, 64, 64, 4
        $region32: #{tpu_custom_call.1} parent=23 // pred_fallthru
          _
        // Predicated region
        $region33: #{tpu_custom_call.1} parent=23 // pred_check
          %p273 = pneg %p118
        $region34: #{tpu_custom_call.1} parent=23 // pred_check_branch
          %275 = sbr.rel (%p273) target = $region36
        $region35: #{tpu_custom_call.1} parent=23 // pred_region
          %s276 = sand.u32 %s21, 1
          %s277 = scalar_lea.sflag [#allocation9], %s276
          %s278 = sand.u32 %s108, 1
          %s279 = smul.addr %s278, 16
          %s280 = scalar_lea.vmem [#allocation10], %s279
          %s282 = ssub.s32 256, 256
          %283 = vsyncadd %s277, %s282
          %s284 = smul.addr %s28, 4
          %s285 = sadd.s32 %s30, %s284
          %s286 = smul.addr %s285, 64
          %s287 = scalar_lea.hbm %s2, %s286
          %s288 = sshll.u32 %s280, 4
          %s289 = int_to_ptr.vmem [resolvable:$true] %s288
          %294 = dma.hbm_to_vmem [thread:$0]  %s287, 256, %s289, %s277, 64, 64, 4
        $region36: #{tpu_custom_call.1} parent=23 // pred_fallthru
          _
      $region24: #{tpu_custom_call.1} parent=5 // pred_fallthru
        _
      %p295 = scmp.le.s32.totalorder 1, %s21
      %p296 = scmp.lt.s32.totalorder %s21, 3
      %p297 = pnand %p295, %p296
      %p298 = pneg %p297
      // Predicated region
      $region37: #{tpu_custom_call.1} parent=5 // pred_check
        _
      $region38: #{tpu_custom_call.1} parent=5 // pred_check_branch
        %300 = sbr.rel (%p297) target = $region40
      $region39: #{tpu_custom_call.1} parent=5 // pred_region
        %s301 = ssub.s32 %s21, 1
        %s302 = sand.u32 %s55, 1
        %s303 = scalar_lea.sflag [#allocation6], %s302
        %s304 = sand.u32 %s55, 1
        %s305 = smul.addr %s304, 16
        %s306 = scalar_lea.vmem [#allocation5], %s305
        // Predicated region
        $region41: #{tpu_custom_call.1} parent=39 // pred_check
          %p307 = pneg %p68
        $region42: #{tpu_custom_call.1} parent=39 // pred_check_branch
          %309 = sbr.rel (%p307) target = $region44
        $region43: #{tpu_custom_call.1} parent=39 // pred_region
          %310 = dma.done %s303, 256
        $region44: #{tpu_custom_call.1} parent=39 // pred_fallthru
          _
        %s311 = sand.u32 %s26, 1
        %s312 = scalar_lea.sflag [#allocation9], %s311
        %s313 = sand.u32 %s83, 1
        %s314 = smul.addr %s313, 16
        %s315 = scalar_lea.vmem [#allocation8], %s314
        // Predicated region
        $region45: #{tpu_custom_call.1} parent=39 // pred_check
          %p316 = pneg %p96
        $region46: #{tpu_custom_call.1} parent=39 // pred_check_branch
          %318 = sbr.rel (%p316) target = $region48
        $region47: #{tpu_custom_call.1} parent=39 // pred_region
          %319 = dma.done %s312, 256
        $region48: #{tpu_custom_call.1} parent=39 // pred_fallthru
          _
        %s320 = sand.u32 %s26, 1
        %s321 = scalar_lea.sflag [#allocation9], %s320
        %s322 = sand.u32 %s111, 1
        %s323 = smul.addr %s322, 16
        %s324 = scalar_lea.vmem [#allocation10], %s323
        // Predicated region
        $region49: #{tpu_custom_call.1} parent=39 // pred_check
          %p325 = pneg %p124
        $region50: #{tpu_custom_call.1} parent=39 // pred_check_branch
          %327 = sbr.rel (%p325) target = $region52
        $region51: #{tpu_custom_call.1} parent=39 // pred_region
          %328 = dma.done %s321, 256
        $region52: #{tpu_custom_call.1} parent=39 // pred_fallthru
          _
        // Predicated region
        $region53: #{tpu_custom_call.1} parent=39 // pred_check
          %p329 = pneg %p145
        $region54: #{tpu_custom_call.1} parent=39 // pred_check_branch
          %331 = sbr.rel (%p329) target = $region56
        $region55: #{tpu_custom_call.1} parent=39 // pred_region
          %332 = dma.done [#allocation12], 256
        $region56: #{tpu_custom_call.1} parent=39 // pred_fallthru
          _
        %s333 = sand.u32 %s55, 1
        %s334 = scalar_lea.sflag [#allocation6], %s333
        %s335 = sand.u32 %s55, 1
        %s336 = smul.addr %s335, 16
        %s337 = scalar_lea.vmem [#allocation5], %s336
        %p338 = pneg %p68
        %p339 = pneg %p65
        %s340 = sand.u32 %s26, 1
        %s341 = scalar_lea.sflag [#allocation9], %s340
        %s342 = sand.u32 %s83, 1
        %s343 = smul.addr %s342, 16
        %s344 = scalar_lea.vmem [#allocation8], %s343
        %p345 = pneg %p96
        %p346 = pneg %p93
        %s347 = sand.u32 %s26, 1
        %s348 = scalar_lea.sflag [#allocation9], %s347
        %s349 = sand.u32 %s111, 1
        %s350 = smul.addr %s349, 16
        %s351 = scalar_lea.vmem [#allocation10], %s350
        %p352 = pneg %p124
        %p353 = pneg %p121
        %p354 = pneg %p145
        %p355 = pneg %p142
        %p356 = pneg %p166
        %p357 = pneg %p163
        %p358 = pneg %p194
        %p359 = pneg %p191
        %s360 = sand.u32 %s181, 1
        %s361 = scalar_lea.sflag [#allocation7], %s360
        %s362 = sand.u32 %s181, 1
        %s363 = smul.addr %s362, 8
        %s364 = scalar_lea.vmem [#allocation13], %s363
        %p366 = scmp.eq.s32.totalorder %s33, 0
        // Predicated region
        $region57: #{tpu_custom_call.1} parent=39 // pred_check
          %p367 = pneg %p366
        $region58: #{tpu_custom_call.1} parent=39 // pred_check_branch
          %369 = sbr.rel (%p367) target = $region60
        $region59: #{tpu_custom_call.1} parent=39 // pred_region
          %vm370 = vcmask 7168
          %371 = vst.msk [vmem:[#allocation2] sm:$0xff] %vm370, -inf
          %372 = vst.msk [vmem:[#allocation2 + $0x8] sm:$0xff] %vm370, -inf
          %373 = vst.msk [vmem:[#allocation2 + $0x10] sm:$0xff] %vm370, -inf
          %374 = vst.msk [vmem:[#allocation2 + $0x18] sm:$0xff] %vm370, -inf
          %375 = vst.msk [vmem:[#allocation3] sm:$0xff] %vm370, 0.0
          %376 = vst.msk [vmem:[#allocation3 + $0x8] sm:$0xff] %vm370, 0.0
          %377 = vst.msk [vmem:[#allocation3 + $0x10] sm:$0xff] %vm370, 0.0
          %378 = vst.msk [vmem:[#allocation3 + $0x18] sm:$0xff] %vm370, 0.0
          %vm379 = vcmask 64512
          %380 = vst.msk [vmem:[#allocation4] sm:$0xff] %vm379, 0.0
          %381 = vst.msk [vmem:[#allocation4 + $0x8] sm:$0xff] %vm379, 0.0
          %382 = vst.msk [vmem:[#allocation4 + $0x10] sm:$0xff] %vm379, 0.0
          %383 = vst.msk [vmem:[#allocation4 + $0x18] sm:$0xff] %vm379, 0.0
        $region60: #{tpu_custom_call.1} parent=39 // pred_fallthru
          _
        %v384 = vld [vmem:[%s306] sm:$0xf]
        %v385 = vld [vmem:[%s306 + $0x4] sm:$0xf]
        %v386 = vld [vmem:[%s306 + $0x8] sm:$0xf]
        %v387 = vld [vmem:[%s306 + $0xc] sm:$0xf]
        %v388 = vld [vmem:[%s315] sm:$0xf]
        %v389 = vld [vmem:[%s315 + $0x4] sm:$0xf]
        %v390 = vld [vmem:[%s315 + $0x8] sm:$0xf]
        %v391 = vld [vmem:[%s315 + $0xc] sm:$0xf]
        %vm392 = vcmask 64512
        %v394 = vsel %vm392, %v384, 0
        %vm396 = vcmask 1043456
        %v398 = vsel %vm396, %v388, 0
        %400 = vmatprep.subr.bf16.mxu0 0
        %401 = vmatpush1.bf16.msra.mxu0 %v398
        %402 = vmatprep.subr.bf16.mxu0 0
        %403 = vmatpush1.bf16.msra.mxu0 0
        %404 = vmatprep.subr.bf16.mxu0 0
        %405 = vmatpush1.bf16.msra.mxu0 0
        %406 = vmatprep.subr.bf16.mxu0 0
        %407 = vmatpush1.bf16.msra.mxu0 0
        %408 = vmatprep.subr.bf16.mxu0 0
        %409 = vmatpush1.bf16.msra.mxu0 0
        %410 = vmatprep.subr.bf16.mxu0 0
        %411 = vmatpush1.bf16.msra.mxu0 0
        %412 = vmatprep.subr.bf16.mxu0 0
        %413 = vmatpush1.bf16.msra.mxu0 0
        %414 = vmatprep.subr.bf16.mxu0 0
        %415 = vmatpush1.bf16.msra.mxu0 0
        %416 = vmatprep.subr.bf16.mxu0 0
        %417 = vmatpush1.bf16.msra.mxu0 0
        %418 = vmatprep.subr.bf16.mxu0 0
        %419 = vmatpush1.bf16.msra.mxu0 0
        %420 = vmatprep.subr.bf16.mxu0 0
        %421 = vmatpush1.bf16.msra.mxu0 0
        %422 = vmatprep.subr.bf16.mxu0 0
        %423 = vmatpush1.bf16.msra.mxu0 0
        %424 = vmatprep.subr.bf16.mxu0 0
        %425 = vmatpush1.bf16.msra.mxu0 0
        %426 = vmatprep.subr.bf16.mxu0 0
        %427 = vmatpush1.bf16.msra.mxu0 0
        %428 = vmatprep.subr.bf16.mxu0 0
        %429 = vmatpush1.bf16.msra.mxu0 0
        %430 = vmatprep.subr.bf16.mxu0 0
        %431 = vmatpush1.bf16.msra.mxu0 0
        %432 = vmatprep.mubr.bf16.mxu0 0
        %433 = vmatmul.mubr.bf16.gmra.mrb[0].mxu0 %v394
        %v434 = vpop.f32.mrb[0].mxu0
        %v435 = vadd.f32 0.0, %v434
        %v436 = vpop.f32.mrb[0].mxu0
        %v437 = vpop.f32.mrb[0].mxu0
        %v438 = vpop.f32.mrb[0].mxu0
        %439 = vdwg.mxu0
        %v441 = vsel %vm392, %v385, 0
        %v444 = vsel %vm396, %v389, 0
        %446 = vmatprep.subr.bf16.mxu0 0
        %447 = vmatpush1.bf16.msra.mxu0 %v444
        %448 = vmatprep.subr.bf16.mxu0 0
        %449 = vmatpush1.bf16.msra.mxu0 0
        %450 = vmatprep.subr.bf16.mxu0 0
        %451 = vmatpush1.bf16.msra.mxu0 0
        %452 = vmatprep.subr.bf16.mxu0 0
        %453 = vmatpush1.bf16.msra.mxu0 0
        %454 = vmatprep.subr.bf16.mxu0 0
        %455 = vmatpush1.bf16.msra.mxu0 0
        %456 = vmatprep.subr.bf16.mxu0 0
        %457 = vmatpush1.bf16.msra.mxu0 0
        %458 = vmatprep.subr.bf16.mxu0 0
        %459 = vmatpush1.bf16.msra.mxu0 0
        %460 = vmatprep.subr.bf16.mxu0 0
        %461 = vmatpush1.bf16.msra.mxu0 0
        %462 = vmatprep.subr.bf16.mxu0 0
        %463 = vmatpush1.bf16.msra.mxu0 0
        %464 = vmatprep.subr.bf16.mxu0 0
        %465 = vmatpush1.bf16.msra.mxu0 0
        %466 = vmatprep.subr.bf16.mxu0 0
        %467 = vmatpush1.bf16.msra.mxu0 0
        %468 = vmatprep.subr.bf16.mxu0 0
        %469 = vmatpush1.bf16.msra.mxu0 0
        %470 = vmatprep.subr.bf16.mxu0 0
        %471 = vmatpush1.bf16.msra.mxu0 0
        %472 = vmatprep.subr.bf16.mxu0 0
        %473 = vmatpush1.bf16.msra.mxu0 0
        %474 = vmatprep.subr.bf16.mxu0 0
        %475 = vmatpush1.bf16.msra.mxu0 0
        %476 = vmatprep.subr.bf16.mxu0 0
        %477 = vmatpush1.bf16.msra.mxu0 0
        %478 = vmatprep.mubr.bf16.mxu0 0
        %479 = vmatmul.mubr.bf16.gmra.mrb[0].mxu0 %v441
        %v480 = vpop.f32.mrb[0].mxu0
        %v481 = vadd.f32 0.0, %v480
        %v482 = vpop.f32.mrb[0].mxu0
        %v483 = vpop.f32.mrb[0].mxu0
        %v484 = vpop.f32.mrb[0].mxu0
        %485 = vdwg.mxu0
        %v487 = vsel %vm392, %v386, 0
        %v490 = vsel %vm396, %v390, 0
        %492 = vmatprep.subr.bf16.mxu0 0
        %493 = vmatpush1.bf16.msra.mxu0 %v490
        %494 = vmatprep.subr.bf16.mxu0 0
        %495 = vmatpush1.bf16.msra.mxu0 0
        %496 = vmatprep.subr.bf16.mxu0 0
        %497 = vmatpush1.bf16.msra.mxu0 0
        %498 = vmatprep.subr.bf16.mxu0 0
        %499 = vmatpush1.bf16.msra.mxu0 0
        %500 = vmatprep.subr.bf16.mxu0 0
        %501 = vmatpush1.bf16.msra.mxu0 0
        %502 = vmatprep.subr.bf16.mxu0 0
        %503 = vmatpush1.bf16.msra.mxu0 0
        %504 = vmatprep.subr.bf16.mxu0 0
        %505 = vmatpush1.bf16.msra.mxu0 0
        %506 = vmatprep.subr.bf16.mxu0 0
        %507 = vmatpush1.bf16.msra.mxu0 0
        %508 = vmatprep.subr.bf16.mxu0 0
        %509 = vmatpush1.bf16.msra.mxu0 0
        %510 = vmatprep.subr.bf16.mxu0 0
        %511 = vmatpush1.bf16.msra.mxu0 0
        %512 = vmatprep.subr.bf16.mxu0 0
        %513 = vmatpush1.bf16.msra.mxu0 0
        %514 = vmatprep.subr.bf16.mxu0 0
        %515 = vmatpush1.bf16.msra.mxu0 0
        %516 = vmatprep.subr.bf16.mxu0 0
        %517 = vmatpush1.bf16.msra.mxu0 0
        %518 = vmatprep.subr.bf16.mxu0 0
        %519 = vmatpush1.bf16.msra.mxu0 0
        %520 = vmatprep.subr.bf16.mxu0 0
        %521 = vmatpush1.bf16.msra.mxu0 0
        %522 = vmatprep.subr.bf16.mxu0 0
        %523 = vmatpush1.bf16.msra.mxu0 0
        %524 = vmatprep.mubr.bf16.mxu0 0
        %525 = vmatmul.mubr.bf16.gmra.mrb[0].mxu0 %v487
        %v526 = vpop.f32.mrb[0].mxu0
        %v527 = vadd.f32 0.0, %v526
        %v528 = vpop.f32.mrb[0].mxu0
        %v529 = vpop.f32.mrb[0].mxu0
        %v530 = vpop.f32.mrb[0].mxu0
        %531 = vdwg.mxu0
        %v533 = vsel %vm392, %v387, 0
        %v536 = vsel %vm396, %v391, 0
        %538 = vmatprep.subr.bf16.mxu0 0
        %539 = vmatpush1.bf16.msra.mxu0 %v536
        %540 = vmatprep.subr.bf16.mxu0 0
        %541 = vmatpush1.bf16.msra.mxu0 0
        %542 = vmatprep.subr.bf16.mxu0 0
        %543 = vmatpush1.bf16.msra.mxu0 0
        %544 = vmatprep.subr.bf16.mxu0 0
        %545 = vmatpush1.bf16.msra.mxu0 0
        %546 = vmatprep.subr.bf16.mxu0 0
        %547 = vmatpush1.bf16.msra.mxu0 0
        %548 = vmatprep.subr.bf16.mxu0 0
        %549 = vmatpush1.bf16.msra.mxu0 0
        %550 = vmatprep.subr.bf16.mxu0 0
        %551 = vmatpush1.bf16.msra.mxu0 0
        %552 = vmatprep.subr.bf16.mxu0 0
        %553 = vmatpush1.bf16.msra.mxu0 0
        %554 = vmatprep.subr.bf16.mxu0 0
        %555 = vmatpush1.bf16.msra.mxu0 0
        %556 = vmatprep.subr.bf16.mxu0 0
        %557 = vmatpush1.bf16.msra.mxu0 0
        %558 = vmatprep.subr.bf16.mxu0 0
        %559 = vmatpush1.bf16.msra.mxu0 0
        %560 = vmatprep.subr.bf16.mxu0 0
        %561 = vmatpush1.bf16.msra.mxu0 0
        %562 = vmatprep.subr.bf16.mxu0 0
        %563 = vmatpush1.bf16.msra.mxu0 0
        %564 = vmatprep.subr.bf16.mxu0 0
        %565 = vmatpush1.bf16.msra.mxu0 0
        %566 = vmatprep.subr.bf16.mxu0 0
        %567 = vmatpush1.bf16.msra.mxu0 0
        %568 = vmatprep.subr.bf16.mxu0 0
        %569 = vmatpush1.bf16.msra.mxu0 0
        %570 = vmatprep.mubr.bf16.mxu0 0
        %571 = vmatmul.mubr.bf16.gmra.mrb[0].mxu0 %v533
        %v572 = vpop.f32.mrb[0].mxu0
        %v573 = vadd.f32 0.0, %v572
        %v574 = vpop.f32.mrb[0].mxu0
        %v575 = vpop.f32.mrb[0].mxu0
        %v576 = vpop.f32.mrb[0].mxu0
        %577 = vdwg.mxu0
        %v578 = vld [vmem:[#allocation2] sm:$0xff]
        %v579 = vld [vmem:[#allocation2 + $0x8] sm:$0xff]
        %v580 = vld [vmem:[#allocation2 + $0x10] sm:$0xff]
        %v581 = vld [vmem:[#allocation2 + $0x18] sm:$0xff]
        %v582 = vsel %vm392, %v435, -inf
        %583 = vmax.xlane.f32.xlu0 %v582
        %v584 = vpop.xlane.xlu0 %583
        %v585 = vsel %vm392, %v481, -inf
        %586 = vmax.xlane.f32.xlu0 %v585
        %v587 = vpop.xlane.xlu0 %586
        %v588 = vsel %vm392, %v527, -inf
        %589 = vmax.xlane.f32.xlu0 %v588
        %v590 = vpop.xlane.xlu0 %589
        %v591 = vsel %vm392, %v573, -inf
        %592 = vmax.xlane.f32.xlu0 %v591
        %v593 = vpop.xlane.xlu0 %592
        %v594 = vmax.f32 %v578, %v584
        %v595 = vmax.f32 %v579, %v587
        %v596 = vmax.f32 %v580, %v590
        %v597 = vmax.f32 %v581, %v593
        %v598 = vsub.f32 %v578, %v594
        %v599 = vsub.f32 %v579, %v595
        %v600 = vsub.f32 %v580, %v596
        %v601 = vsub.f32 %v581, %v597
        %v602 = vmul.f32 %v598, 1.442695
        %v603 = vpow.pop %v602
        %v604 = vmul.f32 %v599, 1.442695
        %v605 = vpow.pop %v604
        %v606 = vmul.f32 %v600, 1.442695
        %v607 = vpow.pop %v606
        %v608 = vmul.f32 %v601, 1.442695
        %v609 = vpow.pop %v608
        %611 = vset.pattern.permute.xlu0 0
        %612 = vperm.xlu0 %611, %v594
        %v613 = vpop.permute.xlu0 %612
        %616 = vset.pattern.permute.xlu0 0
        %617 = vperm.xlu0 %616, %v595
        %v618 = vpop.permute.xlu0 %617
        %621 = vset.pattern.permute.xlu0 0
        %622 = vperm.xlu0 %621, %v596
        %v623 = vpop.permute.xlu0 %622
        %626 = vset.pattern.permute.xlu0 0
        %627 = vperm.xlu0 %626, %v597
        %v628 = vpop.permute.xlu0 %627
        %v630 = vsub.f32 %v435, %v613
        %v631 = vsub.f32 %v481, %v618
        %v632 = vsub.f32 %v527, %v623
        %v633 = vsub.f32 %v573, %v628
        %v634 = vmul.f32 %v630, 1.442695
        %v635 = vpow.pop %v634
        %v636 = vmul.f32 %v631, 1.442695
        %v637 = vpow.pop %v636
        %v638 = vmul.f32 %v632, 1.442695
        %v639 = vpow.pop %v638
        %v640 = vmul.f32 %v633, 1.442695
        %v641 = vpow.pop %v640
        %v642 = vld [vmem:[#allocation3] sm:$0xff]
        %v643 = vld [vmem:[#allocation3 + $0x8] sm:$0xff]
        %v644 = vld [vmem:[#allocation3 + $0x10] sm:$0xff]
        %v645 = vld [vmem:[#allocation3 + $0x18] sm:$0xff]
        %v646 = vmul.f32 %v603, %v642
        %v647 = vmul.f32 %v605, %v643
        %v648 = vmul.f32 %v607, %v644
        %v649 = vmul.f32 %v609, %v645
        %v650 = vsel %vm392, %v635, 0.0
        %651 = vadd.xlane.f32.xlu0 %v650
        %v652 = vpop.xlane.xlu0 %651
        %v653 = vsel %vm392, %v637, 0.0
        %654 = vadd.xlane.f32.xlu0 %v653
        %v655 = vpop.xlane.xlu0 %654
        %v656 = vsel %vm392, %v639, 0.0
        %657 = vadd.xlane.f32.xlu0 %v656
        %v658 = vpop.xlane.xlu0 %657
        %v659 = vsel %vm392, %v641, 0.0
        %660 = vadd.xlane.f32.xlu0 %v659
        %v661 = vpop.xlane.xlu0 %660
        %v662 = vadd.f32 %v646, %v652
        %v663 = vadd.f32 %v647, %v655
        %v664 = vadd.f32 %v648, %v658
        %v665 = vadd.f32 %v649, %v661
        %vm666 = vcmask 7168
        %667 = vst.msk [vmem:[#allocation3] sm:$0xff] %vm666, %v662
        %668 = vst.msk [vmem:[#allocation3 + $0x8] sm:$0xff] %vm666, %v663
        %669 = vst.msk [vmem:[#allocation3 + $0x10] sm:$0xff] %vm666, %v664
        %670 = vst.msk [vmem:[#allocation3 + $0x18] sm:$0xff] %vm666, %v665
        %v671 = vpack.c.bf16 %v635, %v635
        %v672 = vpack.c.bf16 %v637, %v637
        %v673 = vpack.c.bf16 %v639, %v639
        %v674 = vpack.c.bf16 %v641, %v641
        %v675 = vld [vmem:[%s324] sm:$0xf]
        %v676 = vld [vmem:[%s324 + $0x4] sm:$0xf]
        %v677 = vld [vmem:[%s324 + $0x8] sm:$0xf]
        %v678 = vld [vmem:[%s324 + $0xc] sm:$0xf]
        %v680 = vsel %vm392, %v671, 0
        %v683 = vsel %vm396, %v675, 0
        %685 = vmatprep.subr.bf16.mxu0 0
        %686 = vmatpush1.bf16.msra.mxu0 %v683
        %687 = vmatprep.subr.bf16.mxu0 0
        %688 = vmatpush1.bf16.msra.mxu0 0
        %689 = vmatprep.subr.bf16.mxu0 0
        %690 = vmatpush1.bf16.msra.mxu0 0
        %691 = vmatprep.subr.bf16.mxu0 0
        %692 = vmatpush1.bf16.msra.mxu0 0
        %693 = vmatprep.subr.bf16.mxu0 0
        %694 = vmatpush1.bf16.msra.mxu0 0
        %695 = vmatprep.subr.bf16.mxu0 0
        %696 = vmatpush1.bf16.msra.mxu0 0
        %697 = vmatprep.subr.bf16.mxu0 0
        %698 = vmatpush1.bf16.msra.mxu0 0
        %699 = vmatprep.subr.bf16.mxu0 0
        %700 = vmatpush1.bf16.msra.mxu0 0
        %701 = vmatprep.subr.bf16.mxu0 0
        %702 = vmatpush1.bf16.msra.mxu0 0
        %703 = vmatprep.subr.bf16.mxu0 0
        %704 = vmatpush1.bf16.msra.mxu0 0
        %705 = vmatprep.subr.bf16.mxu0 0
        %706 = vmatpush1.bf16.msra.mxu0 0
        %707 = vmatprep.subr.bf16.mxu0 0
        %708 = vmatpush1.bf16.msra.mxu0 0
        %709 = vmatprep.subr.bf16.mxu0 0
        %710 = vmatpush1.bf16.msra.mxu0 0
        %711 = vmatprep.subr.bf16.mxu0 0
        %712 = vmatpush1.bf16.msra.mxu0 0
        %713 = vmatprep.subr.bf16.mxu0 0
        %714 = vmatpush1.bf16.msra.mxu0 0
        %715 = vmatprep.subr.bf16.mxu0 0
        %716 = vmatpush1.bf16.msra.mxu0 0
        %717 = vmatprep.mubr.bf16.mxu0 0
        %718 = vmatmul.mubr.bf16.gmra.mrb[0].mxu0 %v680
        %v719 = vpop.f32.mrb[0].mxu0
        %v720 = vadd.f32 0.0, %v719
        %v721 = vpop.f32.mrb[0].mxu0
        %v722 = vpop.f32.mrb[0].mxu0
        %v723 = vpop.f32.mrb[0].mxu0
        %724 = vdwg.mxu0
        %v726 = vsel %vm392, %v672, 0
        %v729 = vsel %vm396, %v676, 0
        %731 = vmatprep.subr.bf16.mxu0 0
        %732 = vmatpush1.bf16.msra.mxu0 %v729
        %733 = vmatprep.subr.bf16.mxu0 0
        %734 = vmatpush1.bf16.msra.mxu0 0
        %735 = vmatprep.subr.bf16.mxu0 0
        %736 = vmatpush1.bf16.msra.mxu0 0
        %737 = vmatprep.subr.bf16.mxu0 0
        %738 = vmatpush1.bf16.msra.mxu0 0
        %739 = vmatprep.subr.bf16.mxu0 0
        %740 = vmatpush1.bf16.msra.mxu0 0
        %741 = vmatprep.subr.bf16.mxu0 0
        %742 = vmatpush1.bf16.msra.mxu0 0
        %743 = vmatprep.subr.bf16.mxu0 0
        %744 = vmatpush1.bf16.msra.mxu0 0
        %745 = vmatprep.subr.bf16.mxu0 0
        %746 = vmatpush1.bf16.msra.mxu0 0
        %747 = vmatprep.subr.bf16.mxu0 0
        %748 = vmatpush1.bf16.msra.mxu0 0
        %749 = vmatprep.subr.bf16.mxu0 0
        %750 = vmatpush1.bf16.msra.mxu0 0
        %751 = vmatprep.subr.bf16.mxu0 0
        %752 = vmatpush1.bf16.msra.mxu0 0
        %753 = vmatprep.subr.bf16.mxu0 0
        %754 = vmatpush1.bf16.msra.mxu0 0
        %755 = vmatprep.subr.bf16.mxu0 0
        %756 = vmatpush1.bf16.msra.mxu0 0
        %757 = vmatprep.subr.bf16.mxu0 0
        %758 = vmatpush1.bf16.msra.mxu0 0
        %759 = vmatprep.subr.bf16.mxu0 0
        %760 = vmatpush1.bf16.msra.mxu0 0
        %761 = vmatprep.subr.bf16.mxu0 0
        %762 = vmatpush1.bf16.msra.mxu0 0
        %763 = vmatprep.mubr.bf16.mxu0 0
        %764 = vmatmul.mubr.bf16.gmra.mrb[0].mxu0 %v726
        %v765 = vpop.f32.mrb[0].mxu0
        %v766 = vadd.f32 0.0, %v765
        %v767 = vpop.f32.mrb[0].mxu0
        %v768 = vpop.f32.mrb[0].mxu0
        %v769 = vpop.f32.mrb[0].mxu0
        %770 = vdwg.mxu0
        %v772 = vsel %vm392, %v673, 0
        %v775 = vsel %vm396, %v677, 0
        %777 = vmatprep.subr.bf16.mxu0 0
        %778 = vmatpush1.bf16.msra.mxu0 %v775
        %779 = vmatprep.subr.bf16.mxu0 0
        %780 = vmatpush1.bf16.msra.mxu0 0
        %781 = vmatprep.subr.bf16.mxu0 0
        %782 = vmatpush1.bf16.msra.mxu0 0
        %783 = vmatprep.subr.bf16.mxu0 0
        %784 = vmatpush1.bf16.msra.mxu0 0
        %785 = vmatprep.subr.bf16.mxu0 0
        %786 = vmatpush1.bf16.msra.mxu0 0
        %787 = vmatprep.subr.bf16.mxu0 0
        %788 = vmatpush1.bf16.msra.mxu0 0
        %789 = vmatprep.subr.bf16.mxu0 0
        %790 = vmatpush1.bf16.msra.mxu0 0
        %791 = vmatprep.subr.bf16.mxu0 0
        %792 = vmatpush1.bf16.msra.mxu0 0
        %793 = vmatprep.subr.bf16.mxu0 0
        %794 = vmatpush1.bf16.msra.mxu0 0
        %795 = vmatprep.subr.bf16.mxu0 0
        %796 = vmatpush1.bf16.msra.mxu0 0
        %797 = vmatprep.subr.bf16.mxu0 0
        %798 = vmatpush1.bf16.msra.mxu0 0
        %799 = vmatprep.subr.bf16.mxu0 0
        %800 = vmatpush1.bf16.msra.mxu0 0
        %801 = vmatprep.subr.bf16.mxu0 0
        %802 = vmatpush1.bf16.msra.mxu0 0
        %803 = vmatprep.subr.bf16.mxu0 0
        %804 = vmatpush1.bf16.msra.mxu0 0
        %805 = vmatprep.subr.bf16.mxu0 0
        %806 = vmatpush1.bf16.msra.mxu0 0
        %807 = vmatprep.subr.bf16.mxu0 0
        %808 = vmatpush1.bf16.msra.mxu0 0
        %809 = vmatprep.mubr.bf16.mxu0 0
        %810 = vmatmul.mubr.bf16.gmra.mrb[0].mxu0 %v772
        %v811 = vpop.f32.mrb[0].mxu0
        %v812 = vadd.f32 0.0, %v811
        %v813 = vpop.f32.mrb[0].mxu0
        %v814 = vpop.f32.mrb[0].mxu0
        %v815 = vpop.f32.mrb[0].mxu0
        %816 = vdwg.mxu0
        %v818 = vsel %vm392, %v674, 0
        %v821 = vsel %vm396, %v678, 0
        %823 = vmatprep.subr.bf16.mxu0 0
        %824 = vmatpush1.bf16.msra.mxu0 %v821
        %825 = vmatprep.subr.bf16.mxu0 0
        %826 = vmatpush1.bf16.msra.mxu0 0
        %827 = vmatprep.subr.bf16.mxu0 0
        %828 = vmatpush1.bf16.msra.mxu0 0
        %829 = vmatprep.subr.bf16.mxu0 0
        %830 = vmatpush1.bf16.msra.mxu0 0
        %831 = vmatprep.subr.bf16.mxu0 0
        %832 = vmatpush1.bf16.msra.mxu0 0
        %833 = vmatprep.subr.bf16.mxu0 0
        %834 = vmatpush1.bf16.msra.mxu0 0
        %835 = vmatprep.subr.bf16.mxu0 0
        %836 = vmatpush1.bf16.msra.mxu0 0
        %837 = vmatprep.subr.bf16.mxu0 0
        %838 = vmatpush1.bf16.msra.mxu0 0
        %839 = vmatprep.subr.bf16.mxu0 0
        %840 = vmatpush1.bf16.msra.mxu0 0
        %841 = vmatprep.subr.bf16.mxu0 0
        %842 = vmatpush1.bf16.msra.mxu0 0
        %843 = vmatprep.subr.bf16.mxu0 0
        %844 = vmatpush1.bf16.msra.mxu0 0
        %845 = vmatprep.subr.bf16.mxu0 0
        %846 = vmatpush1.bf16.msra.mxu0 0
        %847 = vmatprep.subr.bf16.mxu0 0
        %848 = vmatpush1.bf16.msra.mxu0 0
        %849 = vmatprep.subr.bf16.mxu0 0
        %850 = vmatpush1.bf16.msra.mxu0 0
        %851 = vmatprep.subr.bf16.mxu0 0
        %852 = vmatpush1.bf16.msra.mxu0 0
        %853 = vmatprep.subr.bf16.mxu0 0
        %854 = vmatpush1.bf16.msra.mxu0 0
        %855 = vmatprep.mubr.bf16.mxu0 0
        %856 = vmatmul.mubr.bf16.gmra.mrb[0].mxu0 %v818
        %v857 = vpop.f32.mrb[0].mxu0
        %v858 = vadd.f32 0.0, %v857
        %v859 = vpop.f32.mrb[0].mxu0
        %v860 = vpop.f32.mrb[0].mxu0
        %v861 = vpop.f32.mrb[0].mxu0
        %862 = vdwg.mxu0
        %v863 = vld [vmem:[#allocation4] sm:$0xff]
        %v864 = vld [vmem:[#allocation4 + $0x8] sm:$0xff]
        %v865 = vld [vmem:[#allocation4 + $0x10] sm:$0xff]
        %v866 = vld [vmem:[#allocation4 + $0x18] sm:$0xff]
        %868 = vset.pattern.permute.xlu0 0
        %869 = vperm.xlu0 %868, %v603
        %v870 = vpop.permute.xlu0 %869
        %873 = vset.pattern.permute.xlu0 0
        %874 = vperm.xlu0 %873, %v605
        %v875 = vpop.permute.xlu0 %874
        %878 = vset.pattern.permute.xlu0 0
        %879 = vperm.xlu0 %878, %v607
        %v880 = vpop.permute.xlu0 %879
        %883 = vset.pattern.permute.xlu0 0
        %884 = vperm.xlu0 %883, %v609
        %v885 = vpop.permute.xlu0 %884
        %v887 = vmul.f32 %v870, %v863
        %v888 = vmul.f32 %v875, %v864
        %v889 = vmul.f32 %v880, %v865
        %v890 = vmul.f32 %v885, %v866
        %v891 = vadd.f32 %v887, %v720
        %v892 = vadd.f32 %v888, %v766
        %v893 = vadd.f32 %v889, %v812
        %v894 = vadd.f32 %v890, %v858
        %895 = vst.msk [vmem:[#allocation4] sm:$0xff] %vm392, %v891
        %896 = vst.msk [vmem:[#allocation4 + $0x8] sm:$0xff] %vm392, %v892
        %897 = vst.msk [vmem:[#allocation4 + $0x10] sm:$0xff] %vm392, %v893
        %898 = vst.msk [vmem:[#allocation4 + $0x18] sm:$0xff] %vm392, %v894
        %899 = vst.msk [vmem:[#allocation2] sm:$0xff] %vm666, %v594
        %900 = vst.msk [vmem:[#allocation2 + $0x8] sm:$0xff] %vm666, %v595
        %901 = vst.msk [vmem:[#allocation2 + $0x10] sm:$0xff] %vm666, %v596
        %902 = vst.msk [vmem:[#allocation2 + $0x18] sm:$0xff] %vm666, %v597
        // Predicated region
        $region61: #{tpu_custom_call.1} parent=39 // pred_check
          %p903 = pneg %p366
        $region62: #{tpu_custom_call.1} parent=39 // pred_check_branch
          %905 = sbr.rel (%p903) target = $region64
        $region63: #{tpu_custom_call.1} parent=39 // pred_region
          %v906 = vld [vmem:[#allocation3] sm:$0xff]
          %v907 = vld [vmem:[#allocation3 + $0x8] sm:$0xff]
          %v908 = vld [vmem:[#allocation3 + $0x10] sm:$0xff]
          %v909 = vld [vmem:[#allocation3 + $0x18] sm:$0xff]
          %v910 = vrcp.pop %v906
          %v911 = vrcp.pop %v907
          %v912 = vrcp.pop %v908
          %v913 = vrcp.pop %v909
          %v914 = vld [vmem:[#allocation4] sm:$0xff]
          %v915 = vld [vmem:[#allocation4 + $0x8] sm:$0xff]
          %v916 = vld [vmem:[#allocation4 + $0x10] sm:$0xff]
          %v917 = vld [vmem:[#allocation4 + $0x18] sm:$0xff]
          %919 = vset.pattern.permute.xlu0 0
          %920 = vperm.xlu0 %919, %v910
          %v921 = vpop.permute.xlu0 %920
          %924 = vset.pattern.permute.xlu0 0
          %925 = vperm.xlu0 %924, %v911
          %v926 = vpop.permute.xlu0 %925
          %929 = vset.pattern.permute.xlu0 0
          %930 = vperm.xlu0 %929, %v912
          %v931 = vpop.permute.xlu0 %930
          %934 = vset.pattern.permute.xlu0 0
          %935 = vperm.xlu0 %934, %v913
          %v936 = vpop.permute.xlu0 %935
          %v938 = vmul.f32 %v914, %v921
          %v939 = vmul.f32 %v915, %v926
          %v940 = vmul.f32 %v916, %v931
          %v941 = vmul.f32 %v917, %v936
          %v942 = vpack.c.bf16 %v938, %v938
          %v944 = vunpack.c.l.s4 1983009808
          %v945 = vunpack.c.0.s8 %v944
          %v946 = vlaneseq
          %v947 = vshrl.u32 %v946, 7
          %v948 = vsub.s32 %v945, %v947
          %v949 = vrot.slane %v942, %v948
          %v950 = vpack.c.bf16 %v940, %v940
          %v952 = vunpack.c.l.s4 1983009808
          %v953 = vunpack.c.0.s8 %v952
          %v954 = vlaneseq
          %v955 = vshrl.u32 %v954, 7
          %v956 = vsub.s32 %v953, %v955
          %v957 = vrot.slane %v950, %v956
          %v958 = vcombine.low %v949, %v957
          %v959 = vcombine.high %v949, %v957
          %v961 = vunpack.c.l.s4 1934713408
          %v962 = vunpack.c.0.s8 %v961
          %v963 = vlaneseq
          %v964 = vshrl.u32 %v963, 7
          %v965 = vsub.s32 %v962, %v964
          %v966 = vrot.slane %v958, %v965
          %v968 = vunpack.c.l.s4 1934713408
          %v969 = vunpack.c.0.s8 %v968
          %v970 = vlaneseq
          %v971 = vshrl.u32 %v970, 7
          %v972 = vsub.s32 %v969, %v971
          %v973 = vrot.slane %v959, %v972
          %v974 = vcombine.high %v966, 0
          %v975 = vcombine.high %v973, 0
          %v976 = vpack.c.bf16 %v939, %v939
          %v978 = vunpack.c.l.s4 1983009808
          %v979 = vunpack.c.0.s8 %v978
          %v980 = vlaneseq
          %v981 = vshrl.u32 %v980, 7
          %v982 = vsub.s32 %v979, %v981
          %v983 = vrot.slane %v976, %v982
          %v984 = vpack.c.bf16 %v941, %v941
          %v986 = vunpack.c.l.s4 1983009808
          %v987 = vunpack.c.0.s8 %v986
          %v988 = vlaneseq
          %v989 = vshrl.u32 %v988, 7
          %v990 = vsub.s32 %v987, %v989
          %v991 = vrot.slane %v984, %v990
          %v992 = vcombine.low %v983, %v991
          %v993 = vcombine.high %v983, %v991
          %v995 = vunpack.c.l.s4 1934713408
          %v996 = vunpack.c.0.s8 %v995
          %v997 = vlaneseq
          %v998 = vshrl.u32 %v997, 7
          %v999 = vsub.s32 %v996, %v998
          %v1000 = vrot.slane %v992, %v999
          %v1002 = vunpack.c.l.s4 1934713408
          %v1003 = vunpack.c.0.s8 %v1002
          %v1004 = vlaneseq
          %v1005 = vshrl.u32 %v1004, 7
          %v1006 = vsub.s32 %v1003, %v1005
          %v1007 = vrot.slane %v993, %v1006
          %v1008 = vcombine.high %v1000, 0
          %v1009 = vcombine.high %v1007, 0
          %v1012 = vpack.i.b16 %v1000, %v966
          %v1014 = vshrl.u32 %v966, 16
          %v1015 = vshrl.u32 %v1000, 16
          %v1016 = vpack.i.b16 %v1015, %v1014
          %v1020 = vpack.i.b16 %v1008, %v974
          %v1022 = vshrl.u32 %v974, 16
          %v1023 = vshrl.u32 %v1008, 16
          %v1024 = vpack.i.b16 %v1023, %v1022
          %v1028 = vpack.i.b16 %v1007, %v973
          %v1030 = vshrl.u32 %v973, 16
          %v1031 = vshrl.u32 %v1007, 16
          %v1032 = vpack.i.b16 %v1031, %v1030
          %v1036 = vpack.i.b16 %v1009, %v975
          %v1038 = vshrl.u32 %v975, 16
          %v1039 = vshrl.u32 %v1009, 16
          %v1040 = vpack.i.b16 %v1039, %v1038
          %v1042 = vcombine.low %v1012, %v1028
          %v1044 = vunpack.c.l.s4 1983009808
          %v1045 = vunpack.c.0.s8 %v1044
          %v1046 = vlaneseq
          %v1047 = vshrl.u32 %v1046, 7
          %v1048 = vsub.s32 %v1045, %v1047
          %v1049 = vrot.slane %v1042, %v1048
          %v1050 = vcombine.low %v1020, %v1036
          %v1052 = vunpack.c.l.s4 1983009808
          %v1053 = vunpack.c.0.s8 %v1052
          %v1054 = vlaneseq
          %v1055 = vshrl.u32 %v1054, 7
          %v1056 = vsub.s32 %v1053, %v1055
          %v1057 = vrot.slane %v1050, %v1056
          %v1058 = vcombine.low %v1049, %v1057
          %v1060 = vunpack.c.l.s4 1934713408
          %v1061 = vunpack.c.0.s8 %v1060
          %v1062 = vlaneseq
          %v1063 = vshrl.u32 %v1062, 7
          %v1064 = vsub.s32 %v1061, %v1063
          %v1065 = vrot.slane %v1058, %v1064
          %v1066 = vcombine.high %v1065, 0
          %v1067 = vcombine.low %v1016, %v1032
          %v1069 = vunpack.c.l.s4 1983009808
          %v1070 = vunpack.c.0.s8 %v1069
          %v1071 = vlaneseq
          %v1072 = vshrl.u32 %v1071, 7
          %v1073 = vsub.s32 %v1070, %v1072
          %v1074 = vrot.slane %v1067, %v1073
          %v1075 = vcombine.low %v1024, %v1040
          %v1077 = vunpack.c.l.s4 1983009808
          %v1078 = vunpack.c.0.s8 %v1077
          %v1079 = vlaneseq
          %v1080 = vshrl.u32 %v1079, 7
          %v1081 = vsub.s32 %v1078, %v1080
          %v1082 = vrot.slane %v1075, %v1081
          %v1083 = vcombine.low %v1074, %v1082
          %v1085 = vunpack.c.l.s4 1934713408
          %v1086 = vunpack.c.0.s8 %v1085
          %v1087 = vlaneseq
          %v1088 = vshrl.u32 %v1087, 7
          %v1089 = vsub.s32 %v1086, %v1088
          %v1090 = vrot.slane %v1083, %v1089
          %v1091 = vcombine.high %v1090, 0
          %v1094 = vpack.i.b16 %v1090, %v1065
          %v1095 = vshrl.u32 %v1065, 16
          %v1096 = vshrl.u32 %v1090, 16
          %v1097 = vpack.i.b16 %v1096, %v1095
          %v1100 = vpack.i.b16 %v1091, %v1066
          %v1101 = vshrl.u32 %v1066, 16
          %v1102 = vshrl.u32 %v1091, 16
          %v1103 = vpack.i.b16 %v1102, %v1101
          %1104 = vrot.lane.b32.xlu0 %v1097, 8
          %v1105 = vpop.permute.xlu0 %1104
          %1106 = vrot.lane.b32.xlu0 %v1100, 16
          %v1107 = vpop.permute.xlu0 %1106
          %1108 = vrot.lane.b32.xlu0 %v1103, 24
          %v1109 = vpop.permute.xlu0 %1108
          %v1112 = vsel %vm392, %v1094, %v1105
          %vm1113 = vcmask 130048
          %v1115 = vsel %vm1113, %v1112, %v1107
          %vm1116 = vcmask 195584
          %v1118 = vsel %vm1116, %v1115, %v1109
          %v1119 = vld [vmem:[#allocation11] sm:$0xf]
          %v1120 = vld [vmem:[#allocation11 + $0x4] sm:$0xf]
          %v1121 = vld [vmem:[#allocation11 + $0x8] sm:$0xf]
          %v1122 = vld [vmem:[#allocation11 + $0xc] sm:$0xf]
          %v1123 = vld [vmem:[%s4] sm:$0x1]
          %v1125 = vlaneseq
          %v1126 = vshrl.u32 %v1125, 7
          %v1127 = vsub.s32 0, %v1126
          %v1128 = vrot.slane %v1123, %v1127
          %v1134 = vunpack.c.l.b16 %v1119
          %v1135 = vunpack.c.l.b16 %v1120
          %v1136 = vunpack.c.l.b16 %v1121
          %v1137 = vunpack.c.l.b16 %v1122
          %v1138 = vpack.c.b16 %v1135, %v1134
          %v1139 = vpack.c.b16 %v1137, %v1136
          %vm1142 = vcmask 261120
          %v1143 = vsel %vm1142, %v1118, 0
          %1145 = vmatprep.subr.bf16.mxu0 0
          %1146 = vmatpush1.bf16.msra.mxu0 %v1138
          %1147 = vmatprep.subr.bf16.mxu0 0
          %1148 = vmatpush1.bf16.msra.mxu0 %v1139
          %1149 = vmatprep.subr.bf16.mxu0 0
          %1150 = vmatpush1.bf16.msra.mxu0 0
          %1151 = vmatprep.subr.bf16.mxu0 0
          %1152 = vmatpush1.bf16.msra.mxu0 0
          %1153 = vmatprep.subr.bf16.mxu0 0
          %1154 = vmatpush1.bf16.msra.mxu0 0
          %1155 = vmatprep.subr.bf16.mxu0 0
          %1156 = vmatpush1.bf16.msra.mxu0 0
          %1157 = vmatprep.subr.bf16.mxu0 0
          %1158 = vmatpush1.bf16.msra.mxu0 0
          %1159 = vmatprep.subr.bf16.mxu0 0
          %1160 = vmatpush1.bf16.msra.mxu0 0
          %1161 = vmatprep.subr.bf16.mxu0 0
          %1162 = vmatpush1.bf16.msra.mxu0 0
          %1163 = vmatprep.subr.bf16.mxu0 0
          %1164 = vmatpush1.bf16.msra.mxu0 0
          %1165 = vmatprep.subr.bf16.mxu0 0
          %1166 = vmatpush1.bf16.msra.mxu0 0
          %1167 = vmatprep.subr.bf16.mxu0 0
          %1168 = vmatpush1.bf16.msra.mxu0 0
          %1169 = vmatprep.subr.bf16.mxu0 0
          %1170 = vmatpush1.bf16.msra.mxu0 0
          %1171 = vmatprep.subr.bf16.mxu0 0
          %1172 = vmatpush1.bf16.msra.mxu0 0
          %1173 = vmatprep.subr.bf16.mxu0 0
          %1174 = vmatpush1.bf16.msra.mxu0 0
          %1175 = vmatprep.subr.bf16.mxu0 0
          %1176 = vmatpush1.bf16.msra.mxu0 0
          %1177 = vmatprep.mubr.bf16.mxu0 0
          %1178 = vmatmul.mubr.bf16.gmra.mrb[0].mxu0 %v1143
          %v1179 = vpop.f32.mrb[0].mxu0
          %v1180 = vadd.f32 %v1128, %v1179
          %v1181 = vpop.f32.mrb[0].mxu0
          %v1182 = vpop.f32.mrb[0].mxu0
          %v1183 = vpop.f32.mrb[0].mxu0
          %1184 = vdwg.mxu0
          %1185 = vst.msk [vmem:[%s364] sm:$0xff] %vm1142, %v1180
        $region64: #{tpu_custom_call.1} parent=39 // pred_fallthru
          _
        %s1186 = sand.u32 %s181, 1
        %s1187 = scalar_lea.sflag [#allocation7], %s1186
        %s1188 = sand.u32 %s181, 1
        %s1189 = smul.addr %s1188, 8
        %s1190 = scalar_lea.vmem [#allocation13], %s1189
        // Predicated region
        $region65: #{tpu_custom_call.1} parent=39 // pred_check
          %p1191 = pneg %p191
        $region66: #{tpu_custom_call.1} parent=39 // pred_check_branch
          %1193 = sbr.rel (%p1191) target = $region68
        $region67: #{tpu_custom_call.1} parent=39 // pred_region
          %s1195 = ssub.s32 128, 128
          %1196 = vsyncadd %s1187, %s1195
          %s1197 = sadd.s32 %s32, %s31
          %s1198 = smul.addr %s1197, 128
          %s1199 = scalar_lea.hbm %s5, %s1198
          %s1201 = sshll.u32 %s1190, 4
          %s1202 = int_to_ptr.vmem [resolvable:$true] %s1201
          %1204 = dma.vmem_to_hbm [thread:$0]  %s1202, 128, %s1199, %s1187
        $region68: #{tpu_custom_call.1} parent=39 // pred_fallthru
          _
      $region40: #{tpu_custom_call.1} parent=5 // pred_fallthru
        _
      %p1205 = scmp.le.s32.totalorder 2, %s21
      // Predicated region
      $region69: #{tpu_custom_call.1} parent=5 // pred_check
        %p1206 = pneg %p1205
      $region70: #{tpu_custom_call.1} parent=5 // pred_check_branch
        %1208 = sbr.rel (%p1206) target = $region72
      $region71: #{tpu_custom_call.1} parent=5 // pred_region
        %s1209 = ssub.s32 %s21, 2
        // Predicated region
        $region73: #{tpu_custom_call.1} parent=71 // pred_check
          %p1210 = pneg %p197
        $region74: #{tpu_custom_call.1} parent=71 // pred_check_branch
          %1212 = sbr.rel (%p1210) target = $region76
        $region75: #{tpu_custom_call.1} parent=71 // pred_region
          %s1213 = sand.u32 %s182, 1
          %s1214 = scalar_lea.sflag [#allocation7], %s1213
          %s1215 = sand.u32 %s182, 1
          %s1216 = smul.addr %s1215, 8
          %s1217 = scalar_lea.vmem [#allocation13], %s1216
          %1218 = dma.done %s1214, 128
        $region76: #{tpu_custom_call.1} parent=71 // pred_fallthru
          _
      $region72: #{tpu_custom_call.1} parent=5 // pred_fallthru
        _
    $region6: #{tpu_custom_call.1} parent=1 // loop_footer
      %s25 = sadd.s32 1, %s21
    $region7: #{tpu_custom_call.1} parent=1 // loop_footer_branch
      %20 = sbr.rel target = $region3
    $region8: #{tpu_custom_call.1} parent=1 // loop_exit
      _
    %1219 = vsyncpa [#allocation6], 1
    %s1220 = scalar_lea.sflag [#allocation6], 1
    %1221 = vsyncpa %s1220, 1
    %1222 = vsyncpa [#allocation9], 1
    %s1223 = scalar_lea.sflag [#allocation9], 1
    %1224 = vsyncpa %s1223, 1
    %1225 = vsyncpa [#allocation12], 1
    %1226 = vsyncpa [#allocation7], 1
    %s1227 = scalar_lea.sflag [#allocation7], 1
    %1228 = vsyncpa %s1227, 1

</llo_original>
